<compile_context>
chip_gen: v5e
topology: v5e:2x2
jax: 0.10.0
libtpu: 0.0.40
codegen_flags: <defaults>
</compile_context>

<pallas_src>
import functools

import jax
import jax.numpy as jnp
from jax.experimental import pallas as pl
from jax.experimental.pallas import tpu as pltpu

BN_EPS = 1e-3                      # batch_norm_epsilon from the module
FCN_KERNELS = (8, 5, 3)
FCN_FILTERS = (128, 256, 128)

_HEAD = 8                          # head/tail halo rows (sublane aligned, >= max pad)


def _round_up(a, b):
    return (a + b - 1) // b * b


def _cdiv(a, b):
    return -(-a // b)


def _use_paired_taps():
    """Pair layer-2 taps (contraction 256) only on 256-deep MXUs (v6e / v7x)."""
    try:
        kind = jax.devices()[0].device_kind.lower()
    except Exception:
        return True
    return not any(v in kind for v in ("v2", "v3", "v4", "v5"))


# ---------------------------------------------------------------------------
# Fused Pallas kernel: conv8+SE -> conv5+SE -> conv3 -> global average pool
# ---------------------------------------------------------------------------
def _fused_fcn_kernel(x1_ref, mask_ref,
                      w1_ref, b1_ref,
                      s1w1_ref, s1b1_ref, s1w2_ref, s1b2_ref,
                      w2_ref, b2_ref,
                      s2w1_ref, s2b1_ref, s2w2_ref, s2b2_ref,
                      w3_ref, b3_ref,
                      o_ref, buf1_ref, buf2_ref,
                      *, tb, seg, l_out, pair_l2):
    """One grid step = TB batch elements packed into one flat sequence buffer.

    x1_ref : [M, K1*Cin] bf16 packed im2row (M = TB*seg; layer-1 pad baked in)
    mask   : [M, 1] f32, 1.0 on valid rows (l < l_out within each segment)
    w*_ref : BN-folded conv weights (bf16); b*_ref: folded bias [1, Cout] f32
    s*_ref : Squeeze-Excite params (f32)
    o_ref  : [1, TB, 128] f32 pooled features
    buf*   : bf16 VMEM scratch holding the packed, zero-padded activations
    """
    m = tb * seg
    inv_l = 1.0 / float(l_out)
    mask = mask_ref[...]                                   # [m, 1] f32

    # Zero only the halo rows each step (valid region [8, 8+m) is fully
    # overwritten below). Not gated on program_id so it stays correct when the
    # parallel grid axis is sharded across TensorCores (v7x megacore).
    c1 = buf1_ref.shape[1]
    c2 = buf2_ref.shape[1]
    buf1_ref[0:_HEAD, :] = jnp.zeros((_HEAD, c1), buf1_ref.dtype)
    buf1_ref[_HEAD + m:, :] = jnp.zeros((_HEAD, c1), buf1_ref.dtype)
    buf2_ref[0:_HEAD, :] = jnp.zeros((_HEAD, c2), buf2_ref.dtype)
    buf2_ref[_HEAD + m:, :] = jnp.zeros((_HEAD, c2), buf2_ref.dtype)

    def se_gate(s, w1, b1, w2t, b2):
        # Squeeze-Excite on the VPU/XLU: with only TB rows an MXU pass would be
        # wasted and would bubble the pipeline between the big conv matmuls.
        h = jnp.maximum(
            jnp.sum(s[:, None, :] * w1[None, :, :], axis=-1) + b1, 0.0)   # [tb, R]
        e = jnp.sum(h[:, :, None] * w2t[None, :, :], axis=1) + b2         # [tb, C]
        return jax.nn.sigmoid(e)

    def conv_taps(buf_ref, w_ref, pad, taps_per_group):
        # out row m corresponds to flat buffer row m + _HEAD; the zero halos /
        # masked gap rows between packed segments realise the conv padding.
        acc = None
        for g in range(w_ref.shape[0]):
            off = _HEAD - pad + g * taps_per_group
            lhs = buf_ref[off:off + m, :]
            if taps_per_group == 2:
                # adjacent-tap pairing -> contraction 2*Cin for 256-deep MXUs
                lhs = jnp.concatenate(
                    [lhs, buf_ref[off + 1:off + 1 + m, :]], axis=-1)
            d = jnp.dot(lhs, w_ref[g], preferred_element_type=jnp.float32)
            acc = d if acc is None else acc + d
        return acc

    # ---------------- layer 1: conv(k=8) as one im2row matmul ----------------
    acc1 = jnp.dot(x1_ref[...], w1_ref[...], preferred_element_type=jnp.float32)
    # TODO(synk): Dropout is identity in eval mode (no RNG masking implemented).
    y1 = (jnp.maximum(acc1 + b1_ref[...], 0.0) * mask).reshape(tb, seg, -1)
    s1 = jnp.sum(y1, axis=1) * inv_l                                      # [tb, C1]
    g1 = se_gate(s1, s1w1_ref[...], s1b1_ref[...], s1w2_ref[...], s1b2_ref[...])
    buf1_ref[_HEAD:_HEAD + m, :] = (
        (y1 * g1[:, None, :]).reshape(m, -1).astype(buf1_ref.dtype))

    # ---------------- layer 2: conv(k=5) + SE --------------------------------
    acc2 = conv_taps(buf1_ref, w2_ref, 2, 2 if pair_l2 else 1)
    y2 = (jnp.maximum(acc2 + b2_ref[...], 0.0) * mask).reshape(tb, seg, -1)
    s2 = jnp.sum(y2, axis=1) * inv_l                                      # [tb, C2]
    g2 = se_gate(s2, s2w1_ref[...], s2b1_ref[...], s2w2_ref[...], s2b2_ref[...])
    buf2_ref[_HEAD:_HEAD + m, :] = (
        (y2 * g2[:, None, :]).reshape(m, -1).astype(buf2_ref.dtype))

    # ---------------- layer 3: conv(k=3) + global average pool ---------------
    acc3 = conv_taps(buf2_ref, w3_ref, 1, 1)
    y3 = (jnp.maximum(acc3 + b3_ref[...], 0.0) * mask).reshape(tb, seg, -1)
    o_ref[0] = jnp.sum(y3, axis=1) * inv_l                                # [tb, C3]


# ---------------------------------------------------------------------------
# Trace-time parameter folding + wrapper around pallas_call
# ---------------------------------------------------------------------------
def _fold_bn(p):
    """Fold eval-mode BatchNorm + conv bias into the conv weights.

    Returns w [K, Cin, Cout] (f32) and b [Cout] (f32), channels-last layout.
    """
    scale = p['gamma'] * jax.lax.rsqrt(p['var'] + BN_EPS)
    w = jnp.transpose(p['w'], (2, 1, 0)) * scale[None, None, :]
    b = (p['b'] - p['mean']) * scale + p['beta']
    return w, b


@jax.jit
def fcn_block_forward(x_ncw, params):
    """x_ncw: [B, in_channels, L] (PyTorch layout).  Returns [B, 128]."""
    B, Cin, L = x_ncw.shape
    K1, K2, K3 = FCN_KERNELS
    P1, P2, P3 = K1 // 2, K2 // 2, K3 // 2
    L1 = L + 2 * P1 - K1 + 1                 # output length of all 3 layers
    KC = K1 * Cin

    # Packed flat layout: segment stride S (multiple of 8, >= L1 + max pad so
    # the masked zero gap between segments covers the conv halos).
    S = _round_up(L1 + P2, 8)
    tb = max(1, min(B, _cdiv(256, S)))       # target >= ~256 MXU rows per matmul
    if tb == B and B >= 2 and _cdiv(B, 2) * S >= 256:
        tb = _cdiv(B, 2)                     # keep >= 2 grid steps for v7x's 2 TCs
    nb = _cdiv(B, tb)
    b_pad = nb * tb
    M = tb * S
    LB = M + 2 * _HEAD                       # 8-row zero head + 8-row zero tail

    # Fold BN + bias into weights; cast conv weights to bf16 for the MXU.
    w1f, b1f = _fold_bn(params[0])
    w2f, b2f = _fold_bn(params[1])
    w3f, b3f = _fold_bn(params[2])
    C1, C2, C3 = w1f.shape[2], w2f.shape[2], w3f.shape[2]

    # Layer-1 im2row (Cin is tiny), already embedded in the packed flat layout
    # (zeros on per-segment tail rows and on batch padding).
    x = jnp.transpose(x_ncw, (0, 2, 1))                              # [B, L, Cin]
    xpad = jnp.pad(x, ((0, 0), (P1, P1), (0, 0)))
    rows = jnp.concatenate([xpad[:, k:k + L1, :] for k in range(K1)], axis=-1)
    rows = jnp.pad(rows, ((0, b_pad - B), (0, S - L1), (0, 0)))      # [b_pad, S, KC]
    x1 = rows.reshape(nb * M, KC).astype(jnp.bfloat16)

    # Validity mask of the packed layout (1.0 where l < L1 within a segment).
    mask = (jnp.arange(S) < L1).astype(jnp.float32)
    mask = jnp.tile(mask, (tb,)).reshape(M, 1)

    w1m = w1f.reshape(KC, C1).astype(jnp.bfloat16)
    pair = _use_paired_taps()
    if pair:
        # Pair adjacent taps (contraction 2*C1 = 256) for v6e/v7x's 256-deep
        # MXU; the odd tap is zero-padded (still a single MXU pass).
        w2m = jnp.stack([
            jnp.concatenate([w2f[0], w2f[1]], axis=0),
            jnp.concatenate([w2f[2], w2f[3]], axis=0),
            jnp.concatenate([w2f[4], jnp.zeros_like(w2f[4])], axis=0),
        ]).astype(jnp.bfloat16)                                      # [3, 2*C1, C2]
    else:
        w2m = w2f.astype(jnp.bfloat16)                               # [5, C1, C2]
    w3m = w3f.astype(jnp.bfloat16)

    # Squeeze-Excite params laid out for the VPU formulation (f32).
    se1 = (params[0]['se_w1'], params[0]['se_b1'][None, :],
           params[0]['se_w2'].T, params[0]['se_b2'][None, :])
    se2 = (params[1]['se_w1'], params[1]['se_b1'][None, :],
           params[1]['se_w2'].T, params[1]['se_b2'][None, :])
    R1, R2 = se1[0].shape[0], se2[0].shape[0]

    def const(shape):
        return pl.BlockSpec(shape, lambda i, _nd=len(shape): (0,) * _nd)

    kernel = functools.partial(_fused_fcn_kernel,
                               tb=tb, seg=S, l_out=L1, pair_l2=pair)

    out = pl.pallas_call(
        kernel,
        out_shape=jax.ShapeDtypeStruct((nb, tb, C3), jnp.float32),
        grid=(nb,),
        in_specs=[
            pl.BlockSpec((M, KC), lambda i: (i, 0)),                 # packed im2row x
            const((M, 1)),                                           # validity mask
            const((KC, C1)), const((1, C1)),                         # w1, b1
            const((R1, C1)), const((1, R1)),                         # SE1 fc1
            const((R1, C1)), const((1, C1)),                         # SE1 fc2
            const(tuple(w2m.shape)), const((1, C2)),                 # w2 (grouped), b2
            const((R2, C2)), const((1, R2)),                         # SE2 fc1
            const((R2, C2)), const((1, C2)),                         # SE2 fc2
            const((K3, C2, C3)), const((1, C3)),                     # w3, b3
        ],
        out_specs=pl.BlockSpec((1, tb, C3), lambda i: (i, 0, 0)),
        scratch_shapes=[pltpu.VMEM((LB, C1), jnp.bfloat16),
                        pltpu.VMEM((LB, C2), jnp.bfloat16)],
        compiler_params=pltpu.CompilerParams(
            dimension_semantics=("parallel",)),
    )(x1, mask, w1m, b1f[None, :],
      se1[0], se1[1], se1[2], se1[3],
      w2m, b2f[None, :],
      se2[0], se2[1], se2[2], se2[3],
      w3m, b3f[None, :])

    return out.reshape(b_pad, C3)[:B]                                # [B, 128]


# ---------------------------------------------------------------------------
# Deterministic parameter init (shapes from FCNBlock.__init__)
# ---------------------------------------------------------------------------
def init_params(key, in_channels):
    keys = iter(jax.random.split(key, 32))
    params = []
    cin = in_channels
    for idx, (cout, k) in enumerate(zip(FCN_FILTERS, FCN_KERNELS)):
        p = {
            'w': jax.random.normal(next(keys), (cout, cin, k), jnp.float32)
                 / jnp.sqrt(float(cin * k)),
            'b': 0.1 * jax.random.normal(next(keys), (cout,), jnp.float32),
            'gamma': 1.0 + 0.1 * jax.random.normal(next(keys), (cout,), jnp.float32),
            'beta': 0.1 * jax.random.normal(next(keys), (cout,), jnp.float32),
            'mean': 0.1 * jax.random.normal(next(keys), (cout,), jnp.float32),
            'var': 0.5 + jnp.abs(jax.random.normal(next(keys), (cout,), jnp.float32)),
        }
        if idx < 2:
            r = cout // 16
            p['se_w1'] = (jax.random.normal(next(keys), (r, cout), jnp.float32)
                          / jnp.sqrt(float(cout)))
            p['se_b1'] = 0.1 * jax.random.normal(next(keys), (r,), jnp.float32)
            p['se_w2'] = (jax.random.normal(next(keys), (cout, r), jnp.float32)
                          / jnp.sqrt(float(r)))
            p['se_b2'] = 0.1 * jax.random.normal(next(keys), (cout,), jnp.float32)
        params.append(p)
        cin = cout
    return params


# ---------------------------------------------------------------------------
# References for validation
# ---------------------------------------------------------------------------
def ref_forward_f32(x, params):
    """Pure-f32 NCW reference mirroring the PyTorch module (eval mode)."""
    def conv(x, w, b, pad):
        y = jax.lax.conv_general_dilated(
            x, w, (1,), [(pad, pad)], dimension_numbers=('NCH', 'OIH', 'NCH'))
        return y + b[None, :, None]

    def bn(x, p):
        s = p['gamma'] / jnp.sqrt(p['var'] + BN_EPS)
        return ((x - p['mean'][None, :, None]) * s[None, :, None]
                + p['beta'][None, :, None])

    def se(x, p):
        s = jnp.mean(x, axis=-1)                                  # [B, C]
        h = jnp.maximum(s @ p['se_w1'].T + p['se_b1'], 0.0)
        e = jax.nn.sigmoid(h @ p['se_w2'].T + p['se_b2'])
        return x * e[:, :, None]

    for i, (p, k) in enumerate(zip(params, FCN_KERNELS)):
        x = jnp.maximum(bn(conv(x, p['w'], p['b'], k // 2), p), 0.0)
        if i < 2:
            x = se(x, p)
    return jnp.mean(x, axis=-1)                                   # [B, 128]


def ref_forward_bf16_consistent(x_ncw, params):
    """Reference matching the kernel numerics: BN folded into the weights,
    bf16 matmul operands, f32 accumulation / activations / SE gate."""
    hi = jax.lax.Precision.HIGHEST
    x = jnp.transpose(x_ncw, (0, 2, 1)).astype(jnp.float32)       # [B, L, C]
    for i, k in enumerate(FCN_KERNELS):
        p = params[i]
        wf, bf = _fold_bn(p)                                      # [K, Cin, Cout]
        wb = wf.astype(jnp.bfloat16)
        pad = k // 2
        xpad = jnp.pad(x, ((0, 0), (pad, pad), (0, 0))).astype(jnp.bfloat16)
        l_out = x.shape[1] + 2 * pad - k + 1
        acc = jnp.zeros((x.shape[0], l_out, wf.shape[2]), jnp.float32)
        for kk in range(k):
            acc = acc + jnp.einsum('blc,co->blo',
                                   xpad[:, kk:kk + l_out, :], wb[kk],
                                   preferred_element_type=jnp.float32)
        y = jnp.maximum(acc + bf[None, None, :], 0.0)
        if i < 2:
            s = jnp.mean(y, axis=1)                               # [B, C]
            h = jnp.maximum(
                jnp.einsum('bc,rc->br', s, p['se_w1'], precision=hi)
                + p['se_b1'], 0.0)
            e = jax.nn.sigmoid(
                jnp.einsum('br,cr->bc', h, p['se_w2'], precision=hi)
                + p['se_b2'])
            y = y * e[:, None, :]
        x = y
    return jnp.mean(x, axis=1)                                    # [B, 128]


# ---------------------------------------------------------------------------
if __name__ == "__main__":
    key = jax.random.PRNGKey(0)
    k_x, k_p = jax.random.split(key)

    B, C_IN, SEQ = 2, 4, 16
    x = jax.random.normal(k_x, (B, C_IN, SEQ), jnp.float32)       # PyTorch NCW
    params = init_params(k_p, C_IN)

    out = jax.block_until_ready(fcn_block_forward(x, params))
    assert out.shape == (B, 128), out.shape

    # Tight structural check against a reference with identical numerics
    # (BN folding + bf16 matmul operands, f32 accumulation).
    ref_b = jax.block_until_ready(ref_forward_bf16_consistent(x, params))
    err_struct = float(jnp.max(jnp.abs(out - ref_b)))
    if err_struct > 5e-3:
        raise AssertionError(
            f"mismatch vs numerics-matched reference, max abs err = {err_struct}")

    # Loose check against the pure-f32 PyTorch-semantics reference; the slack
    # only covers bf16 rounding of the MXU operands.
    ref_f = jax.block_until_ready(ref_forward_f32(x, params))
    err_f32 = float(jnp.max(jnp.abs(out - ref_f)))
    if err_f32 > 1e-1:
        raise AssertionError(
            f"mismatch vs f32 reference, max abs err = {err_f32}")

    print("KERNEL_OK")
</pallas_src>

<mosaic_0001>
module attributes {stable_mosaic.version = 11 : i64} {
  func.func @_fused_fcn_kernel(%arg0: i32, %arg1: memref<48x32xbf16, #tpu.memory_space<vmem>>, %arg2: memref<48x1xf32, #tpu.memory_space<vmem>>, %arg3: memref<32x128xbf16, #tpu.memory_space<vmem>>, %arg4: memref<1x128xf32, #tpu.memory_space<vmem>>, %arg5: memref<8x128xf32, #tpu.memory_space<vmem>>, %arg6: memref<1x8xf32, #tpu.memory_space<vmem>>, %arg7: memref<8x128xf32, #tpu.memory_space<vmem>>, %arg8: memref<1x128xf32, #tpu.memory_space<vmem>>, %arg9: memref<3x256x256xbf16, #tpu.memory_space<vmem>>, %arg10: memref<1x256xf32, #tpu.memory_space<vmem>>, %arg11: memref<16x256xf32, #tpu.memory_space<vmem>>, %arg12: memref<1x16xf32, #tpu.memory_space<vmem>>, %arg13: memref<16x256xf32, #tpu.memory_space<vmem>>, %arg14: memref<1x256xf32, #tpu.memory_space<vmem>>, %arg15: memref<3x256x128xbf16, #tpu.memory_space<vmem>>, %arg16: memref<1x128xf32, #tpu.memory_space<vmem>>, %arg17: memref<1x2x128xf32, #tpu.memory_space<vmem>>, %arg18: memref<64x128xbf16, #tpu.memory_space<vmem>>, %arg19: memref<64x256xbf16, #tpu.memory_space<vmem>>) attributes {dimension_semantics = [#tpu.dimension_semantics<parallel>], iteration_bounds = array<i64: 1>, scalar_prefetch = 0 : i64, scratch_operands = 2 : i64, tpu.core_type = #tpu.core_type<tc>, window_params = [{transform_indices = @transform_0, window_bounds = array<i64: 48, 32>}, {pipeline_mode = #tpu.pipeline_mode<synchronous>, transform_indices = @transform_1, window_bounds = array<i64: 48, 1>}, {pipeline_mode = #tpu.pipeline_mode<synchronous>, transform_indices = @transform_2, window_bounds = array<i64: 32, 128>}, {pipeline_mode = #tpu.pipeline_mode<synchronous>, transform_indices = @transform_3, window_bounds = array<i64: 1, 128>}, {pipeline_mode = #tpu.pipeline_mode<synchronous>, transform_indices = @transform_4, window_bounds = array<i64: 8, 128>}, {pipeline_mode = #tpu.pipeline_mode<synchronous>, transform_indices = @transform_5, window_bounds = array<i64: 1, 8>}, {pipeline_mode = #tpu.pipeline_mode<synchronous>, transform_indices = @transform_6, window_bounds = array<i64: 8, 128>}, {pipeline_mode = #tpu.pipeline_mode<synchronous>, transform_indices = @transform_7, window_bounds = array<i64: 1, 128>}, {pipeline_mode = #tpu.pipeline_mode<synchronous>, transform_indices = @transform_8, window_bounds = array<i64: 3, 256, 256>}, {pipeline_mode = #tpu.pipeline_mode<synchronous>, transform_indices = @transform_9, window_bounds = array<i64: 1, 256>}, {pipeline_mode = #tpu.pipeline_mode<synchronous>, transform_indices = @transform_10, window_bounds = array<i64: 16, 256>}, {pipeline_mode = #tpu.pipeline_mode<synchronous>, transform_indices = @transform_11, window_bounds = array<i64: 1, 16>}, {pipeline_mode = #tpu.pipeline_mode<synchronous>, transform_indices = @transform_12, window_bounds = array<i64: 16, 256>}, {pipeline_mode = #tpu.pipeline_mode<synchronous>, transform_indices = @transform_13, window_bounds = array<i64: 1, 256>}, {pipeline_mode = #tpu.pipeline_mode<synchronous>, transform_indices = @transform_14, window_bounds = array<i64: 3, 256, 128>}, {pipeline_mode = #tpu.pipeline_mode<synchronous>, transform_indices = @transform_15, window_bounds = array<i64: 1, 128>}, {transform_indices = @transform_16, window_bounds = array<i64: 1, 2, 128>}]} {
    %c0 = arith.constant 0 : index
    %c0_0 = arith.constant 0 : index
    %0 = vector.load %arg2[%c0, %c0_0] : memref<48x1xf32, #tpu.memory_space<vmem>>, vector<48x1xf32>
    %cst = arith.constant 0.000000e+00 : bf16
    %1 = vector.broadcast %cst : bf16 to vector<8x128xbf16>
    %c0_1 = arith.constant 0 : index
    %c0_2 = arith.constant 0 : index
    %2 = vector.load %arg18[%c0_1, %c0_2] : memref<64x128xbf16, #tpu.memory_space<vmem>>, vector<8x128xbf16>
    tpu.vector_store %arg18[%c0_1, %c0_2], %1 {strides = array<i32>} : memref<64x128xbf16, #tpu.memory_space<vmem>>, vector<8x128xbf16>,
    %cst_3 = arith.constant 0.000000e+00 : bf16
    %3 = vector.broadcast %cst_3 : bf16 to vector<8x128xbf16>
    %c56 = arith.constant 56 : index
    %c0_4 = arith.constant 0 : index
    %4 = vector.load %arg18[%c56, %c0_4] : memref<64x128xbf16, #tpu.memory_space<vmem>>, vector<8x128xbf16>
    tpu.vector_store %arg18[%c56, %c0_4], %3 {strides = array<i32>} : memref<64x128xbf16, #tpu.memory_space<vmem>>, vector<8x128xbf16>,
    %cst_5 = arith.constant 0.000000e+00 : bf16
    %5 = vector.broadcast %cst_5 : bf16 to vector<8x256xbf16>
    %c0_6 = arith.constant 0 : index
    %c0_7 = arith.constant 0 : index
    %6 = vector.load %arg19[%c0_6, %c0_7] : memref<64x256xbf16, #tpu.memory_space<vmem>>, vector<8x256xbf16>
    tpu.vector_store %arg19[%c0_6, %c0_7], %5 {strides = array<i32>} : memref<64x256xbf16, #tpu.memory_space<vmem>>, vector<8x256xbf16>,
    %cst_8 = arith.constant 0.000000e+00 : bf16
    %7 = vector.broadcast %cst_8 : bf16 to vector<8x256xbf16>
    %c56_9 = arith.constant 56 : index
    %c0_10 = arith.constant 0 : index
    %8 = vector.load %arg19[%c56_9, %c0_10] : memref<64x256xbf16, #tpu.memory_space<vmem>>, vector<8x256xbf16>
    tpu.vector_store %arg19[%c56_9, %c0_10], %7 {strides = array<i32>} : memref<64x256xbf16, #tpu.memory_space<vmem>>, vector<8x256xbf16>,
    %c0_11 = arith.constant 0 : index
    %c0_12 = arith.constant 0 : index
    %9 = vector.load %arg1[%c0_11, %c0_12] : memref<48x32xbf16, #tpu.memory_space<vmem>>, vector<48x32xbf16>
    %c0_13 = arith.constant 0 : index
    %c0_14 = arith.constant 0 : index
    %10 = vector.load %arg3[%c0_13, %c0_14] : memref<32x128xbf16, #tpu.memory_space<vmem>>, vector<32x128xbf16>
    %cst_15 = arith.constant dense<0.000000e+00> : vector<48x128xf32>
    %11 = tpu.matmul %9, %10, %cst_15 {dimension_numbers = #tpu.dot_dimension_numbers<[1], [0], [0], [1], [0, 0, 1, 1], [], []>} : vector<48x32xbf16>, vector<32x128xbf16>, vector<48x128xf32> -> vector<48x128xf32>
    %c0_16 = arith.constant 0 : index
    %c0_17 = arith.constant 0 : index
    %12 = vector.load %arg4[%c0_16, %c0_17] : memref<1x128xf32, #tpu.memory_space<vmem>>, vector<1x128xf32>
    %13 = vector.broadcast %12 : vector<1x128xf32> to vector<48x128xf32>
    %14 = arith.addf %11, %13 : vector<48x128xf32>
    %cst_18 = arith.constant 0.000000e+00 : f32
    %15 = vector.broadcast %cst_18 : f32 to vector<48x128xf32>
    %16 = arith.maximumf %14, %15 : vector<48x128xf32>
    %17 = vector.broadcast %0 : vector<48x1xf32> to vector<48x128xf32>
    %18 = arith.mulf %16, %17 : vector<48x128xf32>
    %19 = vector.shape_cast %18 : vector<48x128xf32> to vector<2x24x128xf32>
    %cst_19 = arith.constant dense<0.000000e+00> : vector<2x128xf32>
    %20 = vector.multi_reduction <add>, %19, %cst_19 [1] : vector<2x24x128xf32> to vector<2x128xf32>
    %cst_20 = arith.constant 0.0588235296 : f32
    %21 = vector.broadcast %cst_20 : f32 to vector<2x128xf32>
    %22 = arith.mulf %20, %21 : vector<2x128xf32>
    %c0_21 = arith.constant 0 : index
    %c0_22 = arith.constant 0 : index
    %23 = vector.load %arg5[%c0_21, %c0_22] : memref<8x128xf32, #tpu.memory_space<vmem>>, vector<8x128xf32>
    %c0_23 = arith.constant 0 : index
    %c0_24 = arith.constant 0 : index
    %24 = vector.load %arg6[%c0_23, %c0_24] : memref<1x8xf32, #tpu.memory_space<vmem>>, vector<1x8xf32>
    %c0_25 = arith.constant 0 : index
    %c0_26 = arith.constant 0 : index
    %25 = vector.load %arg7[%c0_25, %c0_26] : memref<8x128xf32, #tpu.memory_space<vmem>>, vector<8x128xf32>
    %c0_27 = arith.constant 0 : index
    %c0_28 = arith.constant 0 : index
    %26 = vector.load %arg8[%c0_27, %c0_28] : memref<1x128xf32, #tpu.memory_space<vmem>>, vector<1x128xf32>
    %27 = vector.shape_cast %22 : vector<2x128xf32> to vector<2x1x128xf32>
    %28 = vector.shape_cast %23 : vector<8x128xf32> to vector<1x8x128xf32>
    %29 = vector.broadcast %27 : vector<2x1x128xf32> to vector<2x8x128xf32>
    %30 = vector.broadcast %28 : vector<1x8x128xf32> to vector<2x8x128xf32>
    %31 = arith.mulf %29, %30 : vector<2x8x128xf32>
    %cst_29 = arith.constant dense<0.000000e+00> : vector<2x8xf32>
    %32 = vector.multi_reduction <add>, %31, %cst_29 [2] : vector<2x8x128xf32> to vector<2x8xf32>
    %33 = vector.broadcast %24 : vector<1x8xf32> to vector<2x8xf32>
    %34 = arith.addf %32, %33 : vector<2x8xf32>
    %cst_30 = arith.constant 0.000000e+00 : f32
    %35 = vector.broadcast %cst_30 : f32 to vector<2x8xf32>
    %36 = arith.maximumf %34, %35 : vector<2x8xf32>
    %37 = vector.shape_cast %36 : vector<2x8xf32> to vector<2x8x1xf32>
    %38 = vector.shape_cast %25 : vector<8x128xf32> to vector<1x8x128xf32>
    %39 = vector.broadcast %37 : vector<2x8x1xf32> to vector<2x8x128xf32>
    %40 = vector.broadcast %38 : vector<1x8x128xf32> to vector<2x8x128xf32>
    %41 = arith.mulf %39, %40 : vector<2x8x128xf32>
    %cst_31 = arith.constant dense<0.000000e+00> : vector<2x128xf32>
    %42 = vector.multi_reduction <add>, %41, %cst_31 [1] : vector<2x8x128xf32> to vector<2x128xf32>
    %43 = vector.broadcast %26 : vector<1x128xf32> to vector<2x128xf32>
    %44 = arith.addf %42, %43 : vector<2x128xf32>
    %45 = arith.negf %44 : vector<2x128xf32>
    %46 = math.exp %45 : vector<2x128xf32>
    %cst_32 = arith.constant 1.000000e+00 : f32
    %47 = vector.broadcast %cst_32 : f32 to vector<2x128xf32>
    %48 = arith.addf %47, %46 : vector<2x128xf32>
    %49 = arith.divf %47, %48 : vector<2x128xf32>
    %50 = vector.shape_cast %49 : vector<2x128xf32> to vector<2x1x128xf32>
    %51 = vector.broadcast %50 : vector<2x1x128xf32> to vector<2x24x128xf32>
    %52 = arith.mulf %19, %51 : vector<2x24x128xf32>
    %53 = vector.shape_cast %52 : vector<2x24x128xf32> to vector<48x128xf32>
    %54 = arith.truncf %53 : vector<48x128xf32> to vector<48x128xbf16>
    %c8 = arith.constant 8 : index
    %c0_33 = arith.constant 0 : index
    %55 = vector.load %arg18[%c8, %c0_33] : memref<64x128xbf16, #tpu.memory_space<vmem>>, vector<48x128xbf16>
    tpu.vector_store %arg18[%c8, %c0_33], %54 {strides = array<i32>} : memref<64x128xbf16, #tpu.memory_space<vmem>>, vector<48x128xbf16>,
    %c6 = arith.constant 6 : index
    %c0_34 = arith.constant 0 : index
    %56 = vector.load %arg18[%c6, %c0_34] : memref<64x128xbf16, #tpu.memory_space<vmem>>, vector<48x128xbf16>
    %c7 = arith.constant 7 : index
    %c0_35 = arith.constant 0 : index
    %57 = vector.load %arg18[%c7, %c0_35] : memref<64x128xbf16, #tpu.memory_space<vmem>>, vector<48x128xbf16>
    %58 = tpu.concatenate %56, %57 in 1 : vector<48x128xbf16>, vector<48x128xbf16> -> vector<48x256xbf16>
    %c0_36 = arith.constant 0 : index
    %c0_37 = arith.constant 0 : index
    %c0_38 = arith.constant 0 : index
    %59 = vector.load %arg9[%c0_36, %c0_37, %c0_38] : memref<3x256x256xbf16, #tpu.memory_space<vmem>>, vector<1x256x256xbf16>
    %60 = vector.shape_cast %59 : vector<1x256x256xbf16> to vector<256x256xbf16>
    %cst_39 = arith.constant dense<0.000000e+00> : vector<48x256xf32>
    %61 = tpu.matmul %58, %60, %cst_39 {dimension_numbers = #tpu.dot_dimension_numbers<[1], [0], [0], [1], [0, 0, 1, 1], [], []>} : vector<48x256xbf16>, vector<256x256xbf16>, vector<48x256xf32> -> vector<48x256xf32>
    %c8_40 = arith.constant 8 : index
    %c0_41 = arith.constant 0 : index
    %62 = vector.load %arg18[%c8_40, %c0_41] : memref<64x128xbf16, #tpu.memory_space<vmem>>, vector<48x128xbf16>
    %c9 = arith.constant 9 : index
    %c0_42 = arith.constant 0 : index
    %63 = vector.load %arg18[%c9, %c0_42] : memref<64x128xbf16, #tpu.memory_space<vmem>>, vector<48x128xbf16>
    %64 = tpu.concatenate %62, %63 in 1 : vector<48x128xbf16>, vector<48x128xbf16> -> vector<48x256xbf16>
    %c1 = arith.constant 1 : index
    %c0_43 = arith.constant 0 : index
    %c0_44 = arith.constant 0 : index
    %65 = vector.load %arg9[%c1, %c0_43, %c0_44] : memref<3x256x256xbf16, #tpu.memory_space<vmem>>, vector<1x256x256xbf16>
    %66 = vector.shape_cast %65 : vector<1x256x256xbf16> to vector<256x256xbf16>
    %cst_45 = arith.constant dense<0.000000e+00> : vector<48x256xf32>
    %67 = tpu.matmul %64, %66, %cst_45 {dimension_numbers = #tpu.dot_dimension_numbers<[1], [0], [0], [1], [0, 0, 1, 1], [], []>} : vector<48x256xbf16>, vector<256x256xbf16>, vector<48x256xf32> -> vector<48x256xf32>
    %68 = arith.addf %61, %67 : vector<48x256xf32>
    %c10 = arith.constant 10 : index
    %c0_46 = arith.constant 0 : index
    %69 = vector.load %arg18[%c10, %c0_46] : memref<64x128xbf16, #tpu.memory_space<vmem>>, vector<48x128xbf16>
    %c11 = arith.constant 11 : index
    %c0_47 = arith.constant 0 : index
    %70 = vector.load %arg18[%c11, %c0_47] : memref<64x128xbf16, #tpu.memory_space<vmem>>, vector<48x128xbf16>
    %71 = tpu.concatenate %69, %70 in 1 : vector<48x128xbf16>, vector<48x128xbf16> -> vector<48x256xbf16>
    %c2 = arith.constant 2 : index
    %c0_48 = arith.constant 0 : index
    %c0_49 = arith.constant 0 : index
    %72 = vector.load %arg9[%c2, %c0_48, %c0_49] : memref<3x256x256xbf16, #tpu.memory_space<vmem>>, vector<1x256x256xbf16>
    %73 = vector.shape_cast %72 : vector<1x256x256xbf16> to vector<256x256xbf16>
    %cst_50 = arith.constant dense<0.000000e+00> : vector<48x256xf32>
    %74 = tpu.matmul %71, %73, %cst_50 {dimension_numbers = #tpu.dot_dimension_numbers<[1], [0], [0], [1], [0, 0, 1, 1], [], []>} : vector<48x256xbf16>, vector<256x256xbf16>, vector<48x256xf32> -> vector<48x256xf32>
    %75 = arith.addf %68, %74 : vector<48x256xf32>
    %c0_51 = arith.constant 0 : index
    %c0_52 = arith.constant 0 : index
    %76 = vector.load %arg10[%c0_51, %c0_52] : memref<1x256xf32, #tpu.memory_space<vmem>>, vector<1x256xf32>
    %77 = vector.broadcast %76 : vector<1x256xf32> to vector<48x256xf32>
    %78 = arith.addf %75, %77 : vector<48x256xf32>
    %cst_53 = arith.constant 0.000000e+00 : f32
    %79 = vector.broadcast %cst_53 : f32 to vector<48x256xf32>
    %80 = arith.maximumf %78, %79 : vector<48x256xf32>
    %81 = vector.broadcast %0 : vector<48x1xf32> to vector<48x256xf32>
    %82 = arith.mulf %80, %81 : vector<48x256xf32>
    %83 = vector.shape_cast %82 : vector<48x256xf32> to vector<2x24x256xf32>
    %cst_54 = arith.constant dense<0.000000e+00> : vector<2x256xf32>
    %84 = vector.multi_reduction <add>, %83, %cst_54 [1] : vector<2x24x256xf32> to vector<2x256xf32>
    %cst_55 = arith.constant 0.0588235296 : f32
    %85 = vector.broadcast %cst_55 : f32 to vector<2x256xf32>
    %86 = arith.mulf %84, %85 : vector<2x256xf32>
    %c0_56 = arith.constant 0 : index
    %c0_57 = arith.constant 0 : index
    %87 = vector.load %arg11[%c0_56, %c0_57] : memref<16x256xf32, #tpu.memory_space<vmem>>, vector<16x256xf32>
    %c0_58 = arith.constant 0 : index
    %c0_59 = arith.constant 0 : index
    %88 = vector.load %arg12[%c0_58, %c0_59] : memref<1x16xf32, #tpu.memory_space<vmem>>, vector<1x16xf32>
    %c0_60 = arith.constant 0 : index
    %c0_61 = arith.constant 0 : index
    %89 = vector.load %arg13[%c0_60, %c0_61] : memref<16x256xf32, #tpu.memory_space<vmem>>, vector<16x256xf32>
    %c0_62 = arith.constant 0 : index
    %c0_63 = arith.constant 0 : index
    %90 = vector.load %arg14[%c0_62, %c0_63] : memref<1x256xf32, #tpu.memory_space<vmem>>, vector<1x256xf32>
    %91 = vector.shape_cast %86 : vector<2x256xf32> to vector<2x1x256xf32>
    %92 = vector.shape_cast %87 : vector<16x256xf32> to vector<1x16x256xf32>
    %93 = vector.broadcast %91 : vector<2x1x256xf32> to vector<2x16x256xf32>
    %94 = vector.broadcast %92 : vector<1x16x256xf32> to vector<2x16x256xf32>
    %95 = arith.mulf %93, %94 : vector<2x16x256xf32>
    %cst_64 = arith.constant dense<0.000000e+00> : vector<2x16xf32>
    %96 = vector.multi_reduction <add>, %95, %cst_64 [2] : vector<2x16x256xf32> to vector<2x16xf32>
    %97 = vector.broadcast %88 : vector<1x16xf32> to vector<2x16xf32>
    %98 = arith.addf %96, %97 : vector<2x16xf32>
    %cst_65 = arith.constant 0.000000e+00 : f32
    %99 = vector.broadcast %cst_65 : f32 to vector<2x16xf32>
    %100 = arith.maximumf %98, %99 : vector<2x16xf32>
    %101 = vector.shape_cast %100 : vector<2x16xf32> to vector<2x16x1xf32>
    %102 = vector.shape_cast %89 : vector<16x256xf32> to vector<1x16x256xf32>
    %103 = vector.broadcast %101 : vector<2x16x1xf32> to vector<2x16x256xf32>
    %104 = vector.broadcast %102 : vector<1x16x256xf32> to vector<2x16x256xf32>
    %105 = arith.mulf %103, %104 : vector<2x16x256xf32>
    %cst_66 = arith.constant dense<0.000000e+00> : vector<2x256xf32>
    %106 = vector.multi_reduction <add>, %105, %cst_66 [1] : vector<2x16x256xf32> to vector<2x256xf32>
    %107 = vector.broadcast %90 : vector<1x256xf32> to vector<2x256xf32>
    %108 = arith.addf %106, %107 : vector<2x256xf32>
    %109 = arith.negf %108 : vector<2x256xf32>
    %110 = math.exp %109 : vector<2x256xf32>
    %cst_67 = arith.constant 1.000000e+00 : f32
    %111 = vector.broadcast %cst_67 : f32 to vector<2x256xf32>
    %112 = arith.addf %111, %110 : vector<2x256xf32>
    %113 = arith.divf %111, %112 : vector<2x256xf32>
    %114 = vector.shape_cast %113 : vector<2x256xf32> to vector<2x1x256xf32>
    %115 = vector.broadcast %114 : vector<2x1x256xf32> to vector<2x24x256xf32>
    %116 = arith.mulf %83, %115 : vector<2x24x256xf32>
    %117 = vector.shape_cast %116 : vector<2x24x256xf32> to vector<48x256xf32>
    %118 = arith.truncf %117 : vector<48x256xf32> to vector<48x256xbf16>
    %c8_68 = arith.constant 8 : index
    %c0_69 = arith.constant 0 : index
    %119 = vector.load %arg19[%c8_68, %c0_69] : memref<64x256xbf16, #tpu.memory_space<vmem>>, vector<48x256xbf16>
    tpu.vector_store %arg19[%c8_68, %c0_69], %118 {strides = array<i32>} : memref<64x256xbf16, #tpu.memory_space<vmem>>, vector<48x256xbf16>,
    %c7_70 = arith.constant 7 : index
    %c0_71 = arith.constant 0 : index
    %120 = vector.load %arg19[%c7_70, %c0_71] : memref<64x256xbf16, #tpu.memory_space<vmem>>, vector<48x256xbf16>
    %c0_72 = arith.constant 0 : index
    %c0_73 = arith.constant 0 : index
    %c0_74 = arith.constant 0 : index
    %121 = vector.load %arg15[%c0_72, %c0_73, %c0_74] : memref<3x256x128xbf16, #tpu.memory_space<vmem>>, vector<1x256x128xbf16>
    %122 = vector.shape_cast %121 : vector<1x256x128xbf16> to vector<256x128xbf16>
    %cst_75 = arith.constant dense<0.000000e+00> : vector<48x128xf32>
    %123 = tpu.matmul %120, %122, %cst_75 {dimension_numbers = #tpu.dot_dimension_numbers<[1], [0], [0], [1], [0, 0, 1, 1], [], []>} : vector<48x256xbf16>, vector<256x128xbf16>, vector<48x128xf32> -> vector<48x128xf32>
    %c8_76 = arith.constant 8 : index
    %c0_77 = arith.constant 0 : index
    %124 = vector.load %arg19[%c8_76, %c0_77] : memref<64x256xbf16, #tpu.memory_space<vmem>>, vector<48x256xbf16>
    %c1_78 = arith.constant 1 : index
    %c0_79 = arith.constant 0 : index
    %c0_80 = arith.constant 0 : index
    %125 = vector.load %arg15[%c1_78, %c0_79, %c0_80] : memref<3x256x128xbf16, #tpu.memory_space<vmem>>, vector<1x256x128xbf16>
    %126 = vector.shape_cast %125 : vector<1x256x128xbf16> to vector<256x128xbf16>
    %cst_81 = arith.constant dense<0.000000e+00> : vector<48x128xf32>
    %127 = tpu.matmul %124, %126, %cst_81 {dimension_numbers = #tpu.dot_dimension_numbers<[1], [0], [0], [1], [0, 0, 1, 1], [], []>} : vector<48x256xbf16>, vector<256x128xbf16>, vector<48x128xf32> -> vector<48x128xf32>
    %128 = arith.addf %123, %127 : vector<48x128xf32>
    %c9_82 = arith.constant 9 : index
    %c0_83 = arith.constant 0 : index
    %129 = vector.load %arg19[%c9_82, %c0_83] : memref<64x256xbf16, #tpu.memory_space<vmem>>, vector<48x256xbf16>
    %c2_84 = arith.constant 2 : index
    %c0_85 = arith.constant 0 : index
    %c0_86 = arith.constant 0 : index
    %130 = vector.load %arg15[%c2_84, %c0_85, %c0_86] : memref<3x256x128xbf16, #tpu.memory_space<vmem>>, vector<1x256x128xbf16>
    %131 = vector.shape_cast %130 : vector<1x256x128xbf16> to vector<256x128xbf16>
    %cst_87 = arith.constant dense<0.000000e+00> : vector<48x128xf32>
    %132 = tpu.matmul %129, %131, %cst_87 {dimension_numbers = #tpu.dot_dimension_numbers<[1], [0], [0], [1], [0, 0, 1, 1], [], []>} : vector<48x256xbf16>, vector<256x128xbf16>, vector<48x128xf32> -> vector<48x128xf32>
    %133 = arith.addf %128, %132 : vector<48x128xf32>
    %c0_88 = arith.constant 0 : index
    %c0_89 = arith.constant 0 : index
    %134 = vector.load %arg16[%c0_88, %c0_89] : memref<1x128xf32, #tpu.memory_space<vmem>>, vector<1x128xf32>
    %135 = vector.broadcast %134 : vector<1x128xf32> to vector<48x128xf32>
    %136 = arith.addf %133, %135 : vector<48x128xf32>
    %cst_90 = arith.constant 0.000000e+00 : f32
    %137 = vector.broadcast %cst_90 : f32 to vector<48x128xf32>
    %138 = arith.maximumf %136, %137 : vector<48x128xf32>
    %139 = vector.broadcast %0 : vector<48x1xf32> to vector<48x128xf32>
    %140 = arith.mulf %138, %139 : vector<48x128xf32>
    %141 = vector.shape_cast %140 : vector<48x128xf32> to vector<2x24x128xf32>
    %cst_91 = arith.constant dense<0.000000e+00> : vector<2x128xf32>
    %142 = vector.multi_reduction <add>, %141, %cst_91 [1] : vector<2x24x128xf32> to vector<2x128xf32>
    %cst_92 = arith.constant 0.0588235296 : f32
    %143 = vector.broadcast %cst_92 : f32 to vector<2x128xf32>
    %144 = arith.mulf %142, %143 : vector<2x128xf32>
    %c0_93 = arith.constant 0 : index
    %c0_94 = arith.constant 0 : index
    %c0_95 = arith.constant 0 : index
    %145 = vector.load %arg17[%c0_93, %c0_94, %c0_95] : memref<1x2x128xf32, #tpu.memory_space<vmem>>, vector<1x2x128xf32>
    %146 = vector.shape_cast %145 : vector<1x2x128xf32> to vector<2x128xf32>
    %147 = vector.shape_cast %144 : vector<2x128xf32> to vector<1x2x128xf32>
    tpu.vector_store %arg17[%c0_93, %c0_94, %c0_95], %147 {strides = array<i32>} : memref<1x2x128xf32, #tpu.memory_space<vmem>>, vector<1x2x128xf32>,
    return
  }
  func.func @transform_0(%arg0: i32) -> (i32, i32) {
    %c0_i32 = arith.constant 0 : i32
    %c0_i32_0 = arith.constant 0 : i32
    return %arg0, %c0_i32 : i32, i32
  }
  func.func @transform_1(%arg0: i32) -> (i32, i32) {
    %c0_i32 = arith.constant 0 : i32
    %c0_i32_0 = arith.constant 0 : i32
    %c0_i32_1 = arith.constant 0 : i32
    return %c0_i32, %c0_i32_0 : i32, i32
  }
  func.func @transform_2(%arg0: i32) -> (i32, i32) {
    %c0_i32 = arith.constant 0 : i32
    %c0_i32_0 = arith.constant 0 : i32
    %c0_i32_1 = arith.constant 0 : i32
    return %c0_i32, %c0_i32_0 : i32, i32
  }
  func.func @transform_3(%arg0: i32) -> (i32, i32) {
    %c0_i32 = arith.constant 0 : i32
    %c0_i32_0 = arith.constant 0 : i32
    %c0_i32_1 = arith.constant 0 : i32
    return %c0_i32, %c0_i32_0 : i32, i32
  }
  func.func @transform_4(%arg0: i32) -> (i32, i32) {
    %c0_i32 = arith.constant 0 : i32
    %c0_i32_0 = arith.constant 0 : i32
    %c0_i32_1 = arith.constant 0 : i32
    return %c0_i32, %c0_i32_0 : i32, i32
  }
  func.func @transform_5(%arg0: i32) -> (i32, i32) {
    %c0_i32 = arith.constant 0 : i32
    %c0_i32_0 = arith.constant 0 : i32
    %c0_i32_1 = arith.constant 0 : i32
    return %c0_i32, %c0_i32_0 : i32, i32
  }
  func.func @transform_6(%arg0: i32) -> (i32, i32) {
    %c0_i32 = arith.constant 0 : i32
    %c0_i32_0 = arith.constant 0 : i32
    %c0_i32_1 = arith.constant 0 : i32
    return %c0_i32, %c0_i32_0 : i32, i32
  }
  func.func @transform_7(%arg0: i32) -> (i32, i32) {
    %c0_i32 = arith.constant 0 : i32
    %c0_i32_0 = arith.constant 0 : i32
    %c0_i32_1 = arith.constant 0 : i32
    return %c0_i32, %c0_i32_0 : i32, i32
  }
  func.func @transform_8(%arg0: i32) -> (i32, i32, i32) {
    %c0_i32 = arith.constant 0 : i32
    %c0_i32_0 = arith.constant 0 : i32
    %c0_i32_1 = arith.constant 0 : i32
    %c0_i32_2 = arith.constant 0 : i32
    return %c0_i32, %c0_i32_0, %c0_i32_1 : i32, i32, i32
  }
  func.func @transform_9(%arg0: i32) -> (i32, i32) {
    %c0_i32 = arith.constant 0 : i32
    %c0_i32_0 = arith.constant 0 : i32
    %c0_i32_1 = arith.constant 0 : i32
    return %c0_i32, %c0_i32_0 : i32, i32
  }
  func.func @transform_10(%arg0: i32) -> (i32, i32) {
    %c0_i32 = arith.constant 0 : i32
    %c0_i32_0 = arith.constant 0 : i32
    %c0_i32_1 = arith.constant 0 : i32
    return %c0_i32, %c0_i32_0 : i32, i32
  }
  func.func @transform_11(%arg0: i32) -> (i32, i32) {
    %c0_i32 = arith.constant 0 : i32
    %c0_i32_0 = arith.constant 0 : i32
    %c0_i32_1 = arith.constant 0 : i32
    return %c0_i32, %c0_i32_0 : i32, i32
  }
  func.func @transform_12(%arg0: i32) -> (i32, i32) {
    %c0_i32 = arith.constant 0 : i32
    %c0_i32_0 = arith.constant 0 : i32
    %c0_i32_1 = arith.constant 0 : i32
    return %c0_i32, %c0_i32_0 : i32, i32
  }
  func.func @transform_13(%arg0: i32) -> (i32, i32) {
    %c0_i32 = arith.constant 0 : i32
    %c0_i32_0 = arith.constant 0 : i32
    %c0_i32_1 = arith.constant 0 : i32
    return %c0_i32, %c0_i32_0 : i32, i32
  }
  func.func @transform_14(%arg0: i32) -> (i32, i32, i32) {
    %c0_i32 = arith.constant 0 : i32
    %c0_i32_0 = arith.constant 0 : i32
    %c0_i32_1 = arith.constant 0 : i32
    %c0_i32_2 = arith.constant 0 : i32
    return %c0_i32, %c0_i32_0, %c0_i32_1 : i32, i32, i32
  }
  func.func @transform_15(%arg0: i32) -> (i32, i32) {
    %c0_i32 = arith.constant 0 : i32
    %c0_i32_0 = arith.constant 0 : i32
    %c0_i32_1 = arith.constant 0 : i32
    return %c0_i32, %c0_i32_0 : i32, i32
  }
  func.func @transform_16(%arg0: i32) -> (i32, i32, i32) {
    %c0_i32 = arith.constant 0 : i32
    %c0_i32_0 = arith.constant 0 : i32
    %c0_i32_1 = arith.constant 0 : i32
    return %arg0, %c0_i32, %c0_i32_0 : i32, i32, i32
  }
}

</mosaic_0001>

<llo_original>
// kernel: tile.8
$region0: #{tile.8}
  #allocation0 [shape = 's32[1]{0}', space=sflag, size = 0x4, scoped, tag = 'scoped memory for tile.8']
  %s0 = inlined_call_operand.vmem [shape: f32[24], index: 0, kind: input, shape index: {}]
  %s1 = inlined_call_operand.vmem [shape: f32[2,24], index: 1, kind: output, shape index: {}]
  // Predicated region
  $region2: #{tile.8} parent=0 // pred_check
    _
  $region3: #{tile.8} parent=0 // pred_check_branch
    %3 = sbr.rel (0) target = $region5
  $region4: #{tile.8} parent=0 // pred_region
    _
  $region5: #{tile.8} parent=0 // pred_fallthru
    _
  %v4 = vld [vmem:[%s0] ss:$0 sm:$0xff]
  %5 = vst [vmem:[%s1] sm:$0x3] %v4

// kernel: tile.0
$region0: #{tile.0}
  %s0 = inlined_call_operand.vmem [shape: f32[2,24], index: 0, kind: input, shape index: {}]
  %s1 = inlined_call_operand.vmem [shape: f32[48,1], index: 1, kind: output, shape index: {}]
  $region1: #{tile.0} parent=0
    #allocation0 [shape = 'u8[4096]{0}', space=vmem, size = 0x1000, scoped, tag = 'scoped mem for input reshape']
    %s3 = ssub.s32 4, 1
    %v4 = vld [vmem:[%s0] sm:%s3]
    %5 = vst [vmem:[#allocation0] sm:%s3] %v4
    %v6 = vld [vmem:[#allocation0] sm:$0x3]
    %vm7 = vcmask 7168
    %8 = vst.msk [vmem:[%s1] ss:$24 sm:$0x3] %vm7, %v6
    %v9 = vld [vmem:[#allocation0] sm:$0x3]
    %10 = vrot.lane.b32.xlu0 %v9, 127
    %v11 = vpop.permute.xlu0 %10
    %vm12 = vcmask 7168
    %s13 = scalar_lea.vmem %s1, 1
    %14 = vst.msk [vmem:[%s13] ss:$24 sm:$0x3] %vm12, %v11
    %v15 = vld [vmem:[#allocation0] sm:$0x3]
    %16 = vrot.lane.b32.xlu0 %v15, 126
    %v17 = vpop.permute.xlu0 %16
    %vm18 = vcmask 7168
    %s19 = scalar_lea.vmem %s1, 2
    %20 = vst.msk [vmem:[%s19] ss:$24 sm:$0x3] %vm18, %v17
    %v21 = vld [vmem:[#allocation0] sm:$0x3]
    %22 = vrot.lane.b32.xlu0 %v21, 125
    %v23 = vpop.permute.xlu0 %22
    %vm24 = vcmask 7168
    %s25 = scalar_lea.vmem %s1, 3
    %26 = vst.msk [vmem:[%s25] ss:$24 sm:$0x3] %vm24, %v23
    %v27 = vld [vmem:[#allocation0] sm:$0x3]
    %28 = vrot.lane.b32.xlu0 %v27, 124
    %v29 = vpop.permute.xlu0 %28
    %vm30 = vcmask 7168
    %s31 = scalar_lea.vmem %s1, 4
    %32 = vst.msk [vmem:[%s31] ss:$24 sm:$0x3] %vm30, %v29
    %v33 = vld [vmem:[#allocation0] sm:$0x3]
    %34 = vrot.lane.b32.xlu0 %v33, 123
    %v35 = vpop.permute.xlu0 %34
    %vm36 = vcmask 7168
    %s37 = scalar_lea.vmem %s1, 5
    %38 = vst.msk [vmem:[%s37] ss:$24 sm:$0x3] %vm36, %v35
    %v39 = vld [vmem:[#allocation0] sm:$0x3]
    %40 = vrot.lane.b32.xlu0 %v39, 122
    %v41 = vpop.permute.xlu0 %40
    %vm42 = vcmask 7168
    %s43 = scalar_lea.vmem %s1, 6
    %44 = vst.msk [vmem:[%s43] ss:$24 sm:$0x3] %vm42, %v41
    %v45 = vld [vmem:[#allocation0] sm:$0x3]
    %46 = vrot.lane.b32.xlu0 %v45, 121
    %v47 = vpop.permute.xlu0 %46
    %vm48 = vcmask 7168
    %s49 = scalar_lea.vmem %s1, 7
    %50 = vst.msk [vmem:[%s49] ss:$24 sm:$0x3] %vm48, %v47
    %s51 = scalar_lea.vmem [#allocation0], 1
    %s52 = smov 3
    %v53 = vld [vmem:[%s51] ss:$-1 sm:%s52]
    %54 = vrot.lane.b32.xlu0 %v53, 120
    %v55 = vpop.permute.xlu0 %54
    %vm56 = vcmask 7168
    %s57 = scalar_lea.vmem %s1, 32
    %58 = vst.msk [vmem:[%s57] ss:$-24 sm:$0x3] %vm56, %v55
    %s59 = scalar_lea.vmem [#allocation0], 1
    %s60 = smov 3
    %v61 = vld [vmem:[%s59] ss:$-1 sm:%s60]
    %62 = vrot.lane.b32.xlu0 %v61, 119
    %v63 = vpop.permute.xlu0 %62
    %vm64 = vcmask 7168
    %s65 = scalar_lea.vmem %s1, 33
    %66 = vst.msk [vmem:[%s65] ss:$-24 sm:$0x3] %vm64, %v63
    %s67 = scalar_lea.vmem [#allocation0], 1
    %s68 = smov 3
    %v69 = vld [vmem:[%s67] ss:$-1 sm:%s68]
    %70 = vrot.lane.b32.xlu0 %v69, 118
    %v71 = vpop.permute.xlu0 %70
    %vm72 = vcmask 7168
    %s73 = scalar_lea.vmem %s1, 34
    %74 = vst.msk [vmem:[%s73] ss:$-24 sm:$0x3] %vm72, %v71
    %s75 = scalar_lea.vmem [#allocation0], 1
    %s76 = smov 3
    %v77 = vld [vmem:[%s75] ss:$-1 sm:%s76]
    %78 = vrot.lane.b32.xlu0 %v77, 117
    %v79 = vpop.permute.xlu0 %78
    %vm80 = vcmask 7168
    %s81 = scalar_lea.vmem %s1, 35
    %82 = vst.msk [vmem:[%s81] ss:$-24 sm:$0x3] %vm80, %v79
    %s83 = scalar_lea.vmem [#allocation0], 1
    %s84 = smov 3
    %v85 = vld [vmem:[%s83] ss:$-1 sm:%s84]
    %86 = vrot.lane.b32.xlu0 %v85, 116
    %v87 = vpop.permute.xlu0 %86
    %vm88 = vcmask 7168
    %s89 = scalar_lea.vmem %s1, 36
    %90 = vst.msk [vmem:[%s89] ss:$-24 sm:$0x3] %vm88, %v87
    %s91 = scalar_lea.vmem [#allocation0], 1
    %s92 = smov 3
    %v93 = vld [vmem:[%s91] ss:$-1 sm:%s92]
    %94 = vrot.lane.b32.xlu0 %v93, 115
    %v95 = vpop.permute.xlu0 %94
    %vm96 = vcmask 7168
    %s97 = scalar_lea.vmem %s1, 37
    %98 = vst.msk [vmem:[%s97] ss:$-24 sm:$0x3] %vm96, %v95
    %s99 = scalar_lea.vmem [#allocation0], 1
    %s100 = smov 3
    %v101 = vld [vmem:[%s99] ss:$-1 sm:%s100]
    %102 = vrot.lane.b32.xlu0 %v101, 114
    %v103 = vpop.permute.xlu0 %102
    %vm104 = vcmask 7168
    %s105 = scalar_lea.vmem %s1, 38
    %106 = vst.msk [vmem:[%s105] ss:$-24 sm:$0x3] %vm104, %v103
    %s107 = scalar_lea.vmem [#allocation0], 1
    %s108 = smov 3
    %v109 = vld [vmem:[%s107] ss:$-1 sm:%s108]
    %110 = vrot.lane.b32.xlu0 %v109, 113
    %v111 = vpop.permute.xlu0 %110
    %vm112 = vcmask 7168
    %s113 = scalar_lea.vmem %s1, 39
    %114 = vst.msk [vmem:[%s113] ss:$-24 sm:$0x3] %vm112, %v111
    %s115 = scalar_lea.vmem [#allocation0], 1
    %s116 = smov 3
    %v117 = vld [vmem:[%s115] ss:$-1 sm:%s116]
    %118 = vrot.lane.b32.xlu0 %v117, 112
    %v119 = vpop.permute.xlu0 %118
    %vm120 = vcmask 7168
    %s121 = scalar_lea.vmem %s1, 40
    %122 = vst.msk [vmem:[%s121] ss:$-24 sm:$0x3] %vm120, %v119
    %s123 = scalar_lea.vmem [#allocation0], 1
    %s124 = smov 3
    %v125 = vld [vmem:[%s123] ss:$-1 sm:%s124]
    %126 = vrot.lane.b32.xlu0 %v125, 111
    %v127 = vpop.permute.xlu0 %126
    %vm128 = vcmask 7168
    %s129 = scalar_lea.vmem %s1, 41
    %130 = vst.msk [vmem:[%s129] ss:$-24 sm:$0x3] %vm128, %v127
    %s131 = scalar_lea.vmem [#allocation0], 1
    %s132 = smov 3
    %v133 = vld [vmem:[%s131] ss:$-1 sm:%s132]
    %134 = vrot.lane.b32.xlu0 %v133, 110
    %v135 = vpop.permute.xlu0 %134
    %vm136 = vcmask 7168
    %s137 = scalar_lea.vmem %s1, 42
    %138 = vst.msk [vmem:[%s137] ss:$-24 sm:$0x3] %vm136, %v135
    %s139 = scalar_lea.vmem [#allocation0], 1
    %s140 = smov 3
    %v141 = vld [vmem:[%s139] ss:$-1 sm:%s140]
    %142 = vrot.lane.b32.xlu0 %v141, 109
    %v143 = vpop.permute.xlu0 %142
    %vm144 = vcmask 7168
    %s145 = scalar_lea.vmem %s1, 43
    %146 = vst.msk [vmem:[%s145] ss:$-24 sm:$0x3] %vm144, %v143
    %s147 = scalar_lea.vmem [#allocation0], 1
    %s148 = smov 3
    %v149 = vld [vmem:[%s147] ss:$-1 sm:%s148]
    %150 = vrot.lane.b32.xlu0 %v149, 108
    %v151 = vpop.permute.xlu0 %150
    %vm152 = vcmask 7168
    %s153 = scalar_lea.vmem %s1, 44
    %154 = vst.msk [vmem:[%s153] ss:$-24 sm:$0x3] %vm152, %v151
    %s155 = scalar_lea.vmem [#allocation0], 1
    %s156 = smov 3
    %v157 = vld [vmem:[%s155] ss:$-1 sm:%s156]
    %158 = vrot.lane.b32.xlu0 %v157, 107
    %v159 = vpop.permute.xlu0 %158
    %vm160 = vcmask 7168
    %s161 = scalar_lea.vmem %s1, 45
    %162 = vst.msk [vmem:[%s161] ss:$-24 sm:$0x3] %vm160, %v159
    %s163 = scalar_lea.vmem [#allocation0], 1
    %s164 = smov 3
    %v165 = vld [vmem:[%s163] ss:$-1 sm:%s164]
    %166 = vrot.lane.b32.xlu0 %v165, 106
    %v167 = vpop.permute.xlu0 %166
    %vm168 = vcmask 7168
    %s169 = scalar_lea.vmem %s1, 46
    %170 = vst.msk [vmem:[%s169] ss:$-24 sm:$0x3] %vm168, %v167
    %s171 = scalar_lea.vmem [#allocation0], 1
    %s172 = smov 3
    %v173 = vld [vmem:[%s171] ss:$-1 sm:%s172]
    %174 = vrot.lane.b32.xlu0 %v173, 105
    %v175 = vpop.permute.xlu0 %174
    %vm176 = vcmask 7168
    %s177 = scalar_lea.vmem %s1, 47
    %178 = vst.msk [vmem:[%s177] ss:$-24 sm:$0x3] %vm176, %v175

// kernel: fcn_block_forward.1
$region0: #{fcn_block_forward.1}
  #allocation0 [shape = 'u32[]', space=smem, size = 0x4, offset = 0x4, fixed_abs, tag = 'smem constant byte address 0x4 - core index']
  #allocation1 [shape = 'u32[72,128]{1,0:T(1,128)}', space=vmem, size = 0x9000, scoped, tag = 'internal scratch']
  #allocation2 [shape = 'bf16[64,128]{1,0:T(8,128)(2,1)}', space=vmem, size = 0x4000, scoped, tag = 'scratch operand']
  #allocation3 [shape = 'bf16[64,256]{1,0:T(8,128)(2,1)}', space=vmem, size = 0x8000, scoped, tag = 'scratch operand']
  %s0 = inlined_call_operand.vmem [shape: bf16[48,32], index: 0, kind: input, shape index: {}]
  %s1 = inlined_call_operand.vmem [shape: f32[48,1], index: 1, kind: input, shape index: {}]
  %s2 = inlined_call_operand.vmem [shape: bf16[32,128], index: 2, kind: input, shape index: {}]
  %s3 = inlined_call_operand.vmem [shape: f32[1,128], index: 3, kind: input, shape index: {}]
  %s4 = inlined_call_operand.vmem [shape: f32[8,128], index: 4, kind: input, shape index: {}]
  %s5 = inlined_call_operand.vmem [shape: f32[1,8], index: 5, kind: input, shape index: {}]
  %s6 = inlined_call_operand.vmem [shape: f32[8,128], index: 6, kind: input, shape index: {}]
  %s7 = inlined_call_operand.vmem [shape: f32[1,128], index: 7, kind: input, shape index: {}]
  %s8 = inlined_call_operand.vmem [shape: bf16[3,256,256], index: 8, kind: input, shape index: {}]
  %s9 = inlined_call_operand.vmem [shape: f32[1,256], index: 9, kind: input, shape index: {}]
  %s10 = inlined_call_operand.vmem [shape: f32[16,256], index: 10, kind: input, shape index: {}]
  %s11 = inlined_call_operand.vmem [shape: f32[1,16], index: 11, kind: input, shape index: {}]
  %s12 = inlined_call_operand.vmem [shape: f32[16,256], index: 12, kind: input, shape index: {}]
  %s13 = inlined_call_operand.vmem [shape: f32[1,256], index: 13, kind: input, shape index: {}]
  %s14 = inlined_call_operand.vmem [shape: bf16[3,256,128], index: 14, kind: input, shape index: {}]
  %s15 = inlined_call_operand.vmem [shape: f32[1,128], index: 15, kind: input, shape index: {}]
  %s16 = inlined_call_operand.hbm [shape: f32[1,2,128], index: 16, kind: output, shape index: {}]
  %s17 = sld [smem:[#allocation0]]
  $region74: #{fcn_block_forward.1} parent=0
    _
  %s19 = ssub.s32 1, %s17
  %s20 = scalar_select 0, %s19, %s17
  $region1: #{fcn_block_forward.1} parent=0
    #allocation4 [shape = 'u8[1024]{0}', space=vmem, size = 0x400, scoped, tag = 'output window, operand 0, single buffered']
    #allocation5 [shape = 's32[1]{0}', space=sflag, size = 0x4, scoped, tag = 'scoped memory for fcn_block_forward.1']
    %21 = vsyncpa [#allocation5], 0
    // Predicated region
    $region2: #{fcn_block_forward.1} parent=1 // pred_check
      _
    $region3: #{fcn_block_forward.1} parent=1 // pred_check_branch
      %23 = sbr.rel (0) target = $region5
    $region4: #{fcn_block_forward.1} parent=1 // pred_region
      _
    $region5: #{fcn_block_forward.1} parent=1 // pred_fallthru
      _
    // Predicated region
    $region6: #{fcn_block_forward.1} parent=1 // pred_check
      _
    $region7: #{fcn_block_forward.1} parent=1 // pred_check_branch
      %25 = sbr.rel (0) target = $region9
    $region8: #{fcn_block_forward.1} parent=1 // pred_region
      _
    $region9: #{fcn_block_forward.1} parent=1 // pred_fallthru
      _
    // Predicated region
    $region10: #{fcn_block_forward.1} parent=1 // pred_check
      _
    $region11: #{fcn_block_forward.1} parent=1 // pred_check_branch
      %27 = sbr.rel (0) target = $region13
    $region12: #{fcn_block_forward.1} parent=1 // pred_region
      _
    $region13: #{fcn_block_forward.1} parent=1 // pred_fallthru
      _
    // Predicated region
    $region14: #{fcn_block_forward.1} parent=1 // pred_check
      _
    $region15: #{fcn_block_forward.1} parent=1 // pred_check_branch
      %29 = sbr.rel (0) target = $region17
    $region16: #{fcn_block_forward.1} parent=1 // pred_region
      _
    $region17: #{fcn_block_forward.1} parent=1 // pred_fallthru
      _
    // Predicated region
    $region18: #{fcn_block_forward.1} parent=1 // pred_check
      _
    $region19: #{fcn_block_forward.1} parent=1 // pred_check_branch
      %31 = sbr.rel (0) target = $region21
    $region20: #{fcn_block_forward.1} parent=1 // pred_region
      _
    $region21: #{fcn_block_forward.1} parent=1 // pred_fallthru
      _
    // Predicated region
    $region22: #{fcn_block_forward.1} parent=1 // pred_check
      _
    $region23: #{fcn_block_forward.1} parent=1 // pred_check_branch
      %33 = sbr.rel (0) target = $region25
    $region24: #{fcn_block_forward.1} parent=1 // pred_region
      _
    $region25: #{fcn_block_forward.1} parent=1 // pred_fallthru
      _
    // Predicated region
    $region26: #{fcn_block_forward.1} parent=1 // pred_check
      _
    $region27: #{fcn_block_forward.1} parent=1 // pred_check_branch
      %35 = sbr.rel (0) target = $region29
    $region28: #{fcn_block_forward.1} parent=1 // pred_region
      _
    $region29: #{fcn_block_forward.1} parent=1 // pred_fallthru
      _
    // Predicated region
    $region30: #{fcn_block_forward.1} parent=1 // pred_check
      _
    $region31: #{fcn_block_forward.1} parent=1 // pred_check_branch
      %37 = sbr.rel (0) target = $region33
    $region32: #{fcn_block_forward.1} parent=1 // pred_region
      _
    $region33: #{fcn_block_forward.1} parent=1 // pred_fallthru
      _
    // Predicated region
    $region34: #{fcn_block_forward.1} parent=1 // pred_check
      _
    $region35: #{fcn_block_forward.1} parent=1 // pred_check_branch
      %39 = sbr.rel (0) target = $region37
    $region36: #{fcn_block_forward.1} parent=1 // pred_region
      _
    $region37: #{fcn_block_forward.1} parent=1 // pred_fallthru
      _
    // Predicated region
    $region38: #{fcn_block_forward.1} parent=1 // pred_check
      _
    $region39: #{fcn_block_forward.1} parent=1 // pred_check_branch
      %41 = sbr.rel (0) target = $region41
    $region40: #{fcn_block_forward.1} parent=1 // pred_region
      _
    $region41: #{fcn_block_forward.1} parent=1 // pred_fallthru
      _
    // Predicated region
    $region42: #{fcn_block_forward.1} parent=1 // pred_check
      _
    $region43: #{fcn_block_forward.1} parent=1 // pred_check_branch
      %43 = sbr.rel (0) target = $region45
    $region44: #{fcn_block_forward.1} parent=1 // pred_region
      _
    $region45: #{fcn_block_forward.1} parent=1 // pred_fallthru
      _
    // Predicated region
    $region46: #{fcn_block_forward.1} parent=1 // pred_check
      _
    $region47: #{fcn_block_forward.1} parent=1 // pred_check_branch
      %45 = sbr.rel (0) target = $region49
    $region48: #{fcn_block_forward.1} parent=1 // pred_region
      _
    $region49: #{fcn_block_forward.1} parent=1 // pred_fallthru
      _
    // Predicated region
    $region50: #{fcn_block_forward.1} parent=1 // pred_check
      _
    $region51: #{fcn_block_forward.1} parent=1 // pred_check_branch
      %47 = sbr.rel (0) target = $region53
    $region52: #{fcn_block_forward.1} parent=1 // pred_region
      _
    $region53: #{fcn_block_forward.1} parent=1 // pred_fallthru
      _
    // Predicated region
    $region54: #{fcn_block_forward.1} parent=1 // pred_check
      _
    $region55: #{fcn_block_forward.1} parent=1 // pred_check_branch
      %49 = sbr.rel (0) target = $region57
    $region56: #{fcn_block_forward.1} parent=1 // pred_region
      _
    $region57: #{fcn_block_forward.1} parent=1 // pred_fallthru
      _
    // Predicated region
    $region58: #{fcn_block_forward.1} parent=1 // pred_check
      _
    $region59: #{fcn_block_forward.1} parent=1 // pred_check_branch
      %51 = sbr.rel (0) target = $region61
    $region60: #{fcn_block_forward.1} parent=1 // pred_region
      _
    $region61: #{fcn_block_forward.1} parent=1 // pred_fallthru
      _
    // Predicated region
    $region62: #{fcn_block_forward.1} parent=1 // pred_check
      _
    $region63: #{fcn_block_forward.1} parent=1 // pred_check_branch
      %53 = sbr.rel (0) target = $region65
    $region64: #{fcn_block_forward.1} parent=1 // pred_region
      _
    $region65: #{fcn_block_forward.1} parent=1 // pred_fallthru
      _
    %v55 = vld [vmem:[%s1] sm:$0xff]
    %v56 = vld [vmem:[%s1 + $0x8] sm:$0xff]
    %v57 = vld [vmem:[%s1 + $0x10] sm:$0xff]
    %v58 = vld [vmem:[%s1 + $0x18] sm:$0xff]
    %v59 = vld [vmem:[%s1 + $0x20] sm:$0xff]
    %v60 = vld [vmem:[%s1 + $0x28] sm:$0xff]
    %61 = vst [vmem:[#allocation2] sm:$0xf] 0
    %62 = vst [vmem:[#allocation2 + $0x1c] sm:$0xf] 0
    %63 = vst [vmem:[#allocation3] sm:$0xff] 0
    %64 = vst [vmem:[#allocation3 + $0x38] sm:$0xff] 0
    %v65 = vld [vmem:[%s0] sm:$0xf]
    %v66 = vld [vmem:[%s0 + $0x4] sm:$0xf]
    %v67 = vld [vmem:[%s0 + $0x8] sm:$0xf]
    %v68 = vld [vmem:[%s0 + $0xc] sm:$0xf]
    %v69 = vld [vmem:[%s0 + $0x10] sm:$0xf]
    %v70 = vld [vmem:[%s0 + $0x14] sm:$0xf]
    %v71 = vld [vmem:[%s2] sm:$0xf]
    %v72 = vld [vmem:[%s2 + $0x4] sm:$0xf]
    %v73 = vld [vmem:[%s2 + $0x8] sm:$0xf]
    %v74 = vld [vmem:[%s2 + $0xc] sm:$0xf]
    %v75 = vld [vmem:[%s3] sm:$0x1]
    %v77 = vperm.slane %v75, 0
    %v85 = vunpack.c.l.b16 %v65
    %v86 = vunpack.c.l.b16 %v66
    %v87 = vunpack.c.l.b16 %v67
    %v88 = vunpack.c.l.b16 %v68
    %v89 = vunpack.c.l.b16 %v69
    %v90 = vunpack.c.l.b16 %v70
    %v91 = vpack.c.b16 %v86, %v85
    %v92 = vpack.c.b16 %v88, %v87
    %v93 = vpack.c.b16 %v90, %v89
    %v98 = vunpack.c.l.b16 %v71
    %v99 = vunpack.c.l.b16 %v72
    %v100 = vunpack.c.l.b16 %v73
    %v101 = vunpack.c.l.b16 %v74
    %v102 = vpack.c.b16 %v99, %v98
    %v103 = vpack.c.b16 %v101, %v100
    %vm106 = vcmask 261120
    %v108 = vsel %vm106, %v91, 0
    %v111 = vsel %vm106, %v92, 0
    %v114 = vsel %vm106, %v93, 0
    %116 = vmatpush.bf16.msra.mxu0 0
    %117 = vmatpush.bf16.msra.mxu0 0
    %118 = vmatpush.bf16.msra.mxu0 0
    %119 = vmatpush.bf16.msra.mxu0 0
    %120 = vmatpush.bf16.msra.mxu0 0
    %121 = vmatpush.bf16.msra.mxu0 0
    %122 = vmatpush.bf16.msra.mxu0 %v103
    %123 = vmatpush.bf16.msra.mxu0 %v102
    %124 = vmatmul.bf16.gmra.mxu0 %v108
    %v125 = vpop.f32.mrf.mxu0
    %v126 = vadd.f32 %v77, %v125
    %v127 = vpop.f32.mrf.mxu0
    %v128 = vadd.f32 %v77, %v127
    %129 = vmatmul.bf16.gmra.mxu0 %v111
    %v130 = vpop.f32.mrf.mxu0
    %v131 = vadd.f32 %v77, %v130
    %v132 = vpop.f32.mrf.mxu0
    %v133 = vadd.f32 %v77, %v132
    %134 = vmatmul.bf16.gmra.mxu0 %v114
    %v135 = vpop.f32.mrf.mxu0
    %v136 = vadd.f32 %v77, %v135
    %v137 = vpop.f32.mrf.mxu0
    %v138 = vadd.f32 %v77, %v137
    %139 = vdwg.mxu0
    %v140 = vmax.f32 %v126, 0.0
    %v141 = vmax.f32 %v128, 0.0
    %v142 = vmax.f32 %v131, 0.0
    %v143 = vmax.f32 %v133, 0.0
    %v144 = vmax.f32 %v136, 0.0
    %v145 = vmax.f32 %v138, 0.0
    %147 = vset.pattern.permute.xlu0 0
    %148 = vperm.xlu0 %147, %v55
    %v149 = vpop.permute.xlu0 %148
    %152 = vset.pattern.permute.xlu0 0
    %153 = vperm.xlu0 %152, %v56
    %v154 = vpop.permute.xlu0 %153
    %157 = vset.pattern.permute.xlu0 0
    %158 = vperm.xlu0 %157, %v57
    %v159 = vpop.permute.xlu0 %158
    %162 = vset.pattern.permute.xlu0 0
    %163 = vperm.xlu0 %162, %v58
    %v164 = vpop.permute.xlu0 %163
    %167 = vset.pattern.permute.xlu0 0
    %168 = vperm.xlu0 %167, %v59
    %v169 = vpop.permute.xlu0 %168
    %172 = vset.pattern.permute.xlu0 0
    %173 = vperm.xlu0 %172, %v60
    %v174 = vpop.permute.xlu0 %173
    %v176 = vmul.f32 %v140, %v149
    %v177 = vmul.f32 %v141, %v154
    %v178 = vmul.f32 %v142, %v159
    %v179 = vmul.f32 %v143, %v164
    %v180 = vmul.f32 %v144, %v169
    %v181 = vmul.f32 %v145, %v174
    %v182 = vadd.f32 %v176, %v177
    %v183 = vadd.f32 %v182, %v178
    %v184 = vrot.slane %v183, 4
    %v185 = vadd.f32 %v183, %v184
    %v186 = vrot.slane %v185, 2
    %v187 = vadd.f32 %v185, %v186
    %v188 = vrot.slane %v187, 1
    %v189 = vadd.f32 %v187, %v188
    %v190 = vadd.f32 %v179, %v180
    %v191 = vadd.f32 %v190, %v181
    %v192 = vrot.slane %v191, 4
    %v193 = vadd.f32 %v191, %v192
    %v194 = vrot.slane %v193, 2
    %v195 = vadd.f32 %v193, %v194
    %v196 = vrot.slane %v195, 1
    %v197 = vadd.f32 %v195, %v196
    %v198 = vmul.f32 %v189, 0.05882353
    %v199 = vmul.f32 %v197, 0.05882353
    %v200 = vld [vmem:[%s4] sm:$0xff]
    %v201 = vld [vmem:[%s5] sm:$0x1]
    %v202 = vld [vmem:[%s6] sm:$0xff]
    %v203 = vld [vmem:[%s7] sm:$0x1]
    %v204 = vmul.f32 %v198, %v200
    %v205 = vmul.f32 %v199, %v200
    %206 = vadd.xlane.f32.xlu0 %v204
    %v207 = vpop.xlane.xlu0 %206
    %208 = vadd.xlane.f32.xlu0 %v205
    %v209 = vpop.xlane.xlu0 %208
    %v211 = vperm.slane %v201, 0
    %v212 = vlaneseq
    %v213 = vshrl.u32 %v212, 7
    %215 = vset.pattern.permute.xlu0 %v213
    %216 = vperm.xlu0 %215, %v211
    %v217 = vpop.permute.xlu0 %216
    %v219 = vadd.f32 %v207, %v217
    %v220 = vadd.f32 %v209, %v217
    %v221 = vmax.f32 %v219, 0.0
    %v222 = vmax.f32 %v220, 0.0
    %224 = vset.pattern.permute.xlu0 0
    %225 = vperm.xlu0 %224, %v221
    %v226 = vpop.permute.xlu0 %225
    %229 = vset.pattern.permute.xlu0 0
    %230 = vperm.xlu0 %229, %v222
    %v231 = vpop.permute.xlu0 %230
    %v233 = vmul.f32 %v226, %v202
    %v234 = vmul.f32 %v231, %v202
    %v235 = vrot.slane %v233, 4
    %v236 = vadd.f32 %v233, %v235
    %v237 = vrot.slane %v236, 2
    %v238 = vadd.f32 %v236, %v237
    %v239 = vrot.slane %v238, 1
    %v240 = vadd.f32 %v238, %v239
    %v241 = vrot.slane %v234, 4
    %v242 = vadd.f32 %v234, %v241
    %v243 = vrot.slane %v242, 2
    %v244 = vadd.f32 %v242, %v243
    %v245 = vrot.slane %v244, 1
    %v246 = vadd.f32 %v244, %v245
    %v248 = vperm.slane %v203, 0
    %v250 = vadd.f32 %v240, %v248
    %v251 = vadd.f32 %v246, %v248
    %v252 = vxor.u32 %v250, 2147483648
    %v253 = vxor.u32 %v251, 2147483648
    %v254 = vmul.f32 %v252, 1.442695
    %v255 = vpow.pop %v254
    %v256 = vmul.f32 %v253, 1.442695
    %v257 = vpow.pop %v256
    %v258 = vadd.f32 %v255, 1.0
    %v259 = vadd.f32 %v257, 1.0
    %v260 = vrcp.pop %v258
    %v261 = vmul.f32 %v258, %v260
    %v262 = vsub.f32 1.0, %v261
    %v263 = vmul.f32 %v260, %v262
    %v264 = vadd.f32 %v260, %v263
    %vm265 = vweird.f32 %v258
    %vm266 = vweird.f32 %v260
    %vm267 = vmor %vm265, %vm266
    %v268 = vsel %vm267, %v260, %v264
    %v269 = vand.u32 2147483647, %v258
    %vm270 = vcmp.eq.f32.partialorder %v269, 8.507059e+37
    %v271 = vand.u32 %v258, 2147483648
    %v272 = vor.u32 1.1754944e-38, %v271
    %v273 = vsel %vm270, %v272, %v268
    %v274 = vmul.f32 1.0, %v273
    %v275 = vrcp.pop %v259
    %v276 = vmul.f32 %v259, %v275
    %v277 = vsub.f32 1.0, %v276
    %v278 = vmul.f32 %v275, %v277
    %v279 = vadd.f32 %v275, %v278
    %vm280 = vweird.f32 %v259
    %vm281 = vweird.f32 %v275
    %vm282 = vmor %vm280, %vm281
    %v283 = vsel %vm282, %v275, %v279
    %v284 = vand.u32 2147483647, %v259
    %vm285 = vcmp.eq.f32.partialorder %v284, 8.507059e+37
    %v286 = vand.u32 %v259, 2147483648
    %v287 = vor.u32 1.1754944e-38, %v286
    %v288 = vsel %vm285, %v287, %v283
    %v289 = vmul.f32 1.0, %v288
    %v290 = vperm.slane %v274, 0
    %v291 = vperm.slane %v289, 0
    %v292 = vmul.f32 %v176, %v290
    %v293 = vmul.f32 %v177, %v290
    %v294 = vmul.f32 %v178, %v290
    %v295 = vmul.f32 %v179, %v291
    %v296 = vmul.f32 %v180, %v291
    %v297 = vmul.f32 %v181, %v291
    %v298 = vpack.c.bf16 %v292, %v292
    %v299 = vpack.c.bf16 %v293, %v293
    %v300 = vpack.c.bf16 %v294, %v294
    %v301 = vpack.c.bf16 %v295, %v295
    %v302 = vpack.c.bf16 %v296, %v296
    %v303 = vpack.c.bf16 %v297, %v297
    %304 = vst [vmem:[#allocation2 + $0x4] sm:$0xf] %v298
    %305 = vst [vmem:[#allocation2 + $0x8] sm:$0xf] %v299
    %306 = vst [vmem:[#allocation2 + $0xc] sm:$0xf] %v300
    %307 = vst [vmem:[#allocation2 + $0x10] sm:$0xf] %v301
    %308 = vst [vmem:[#allocation2 + $0x14] sm:$0xf] %v302
    %309 = vst [vmem:[#allocation2 + $0x18] sm:$0xf] %v303
    %v310 = vld [vmem:[#allocation2] sm:$0x8]
    %v311 = vld [vmem:[#allocation2 + $0x4] sm:$0xf]
    %v312 = vld [vmem:[#allocation2 + $0x8] sm:$0xf]
    %v313 = vld [vmem:[#allocation2 + $0xc] sm:$0xf]
    %v314 = vld [vmem:[#allocation2 + $0x10] sm:$0xf]
    %v315 = vld [vmem:[#allocation2 + $0x14] sm:$0xf]
    %v316 = vld [vmem:[#allocation2 + $0x18] sm:$0x7]
    %v317 = vld [vmem:[#allocation2 + $0x18] sm:$0xf]
    %v325 = vunpack.c.l.b16 %v310
    %v326 = vunpack.c.l.b16 %v311
    %v327 = vunpack.c.l.b16 %v312
    %v328 = vunpack.c.l.b16 %v313
    %v329 = vunpack.c.l.b16 %v314
    %v330 = vunpack.c.l.b16 %v315
    %v331 = vunpack.c.l.b16 %v316
    %v332 = vpack.c.b16 %v326, %v325
    %v333 = vpack.c.b16 %v328, %v327
    %v334 = vpack.c.b16 %v330, %v329
    %v335 = vpack.c.b16 %v331, %v331
    %v337 = vunpack.c.l.b16 %v317
    %v338 = vpack.c.b16 %v337, %v337
    %vm339 = vsmask.f32 7424
    %v341 = vshrl.u32 %v332, 16
    %v343 = vshll.u32 %v332, 16
    %v345 = vrot.slane %v343, 1
    %v346 = vor.u32 %v341, %v345
    %v348 = vshll.u32 %v333, 16
    %v350 = vrot.slane %v348, 1
    %v351 = vsel %vm339, %v346, %v350
    %v352 = vshrl.u32 %v333, 16
    %v354 = vor.u32 %v352, %v350
    %v356 = vshll.u32 %v334, 16
    %v358 = vrot.slane %v356, 1
    %v359 = vsel %vm339, %v354, %v358
    %v360 = vshrl.u32 %v334, 16
    %v362 = vor.u32 %v360, %v358
    %v364 = vshll.u32 %v338, 16
    %v366 = vrot.slane %v364, 1
    %v367 = vsel %vm339, %v362, %v366
    %v368 = vshrl.u32 %v338, 16
    %v370 = vor.u32 %v368, %v366
    %v371 = vld [vmem:[%s8] sm:$0xff]
    %v372 = vld [vmem:[%s8 + $0x8] sm:$0xff]
    %v373 = vld [vmem:[%s8 + $0x10] sm:$0xff]
    %v374 = vld [vmem:[%s8 + $0x18] sm:$0xff]
    %v375 = vld [vmem:[%s8 + $0x20] sm:$0xff]
    %v376 = vld [vmem:[%s8 + $0x28] sm:$0xff]
    %v377 = vld [vmem:[%s8 + $0x30] sm:$0xff]
    %v378 = vld [vmem:[%s8 + $0x38] sm:$0xff]
    %v379 = vld [vmem:[%s8 + $0x40] sm:$0xff]
    %v380 = vld [vmem:[%s8 + $0x48] sm:$0xff]
    %v381 = vld [vmem:[%s8 + $0x50] sm:$0xff]
    %v382 = vld [vmem:[%s8 + $0x58] sm:$0xff]
    %v383 = vld [vmem:[%s8 + $0x60] sm:$0xff]
    %v384 = vld [vmem:[%s8 + $0x68] sm:$0xff]
    %v385 = vld [vmem:[%s8 + $0x70] sm:$0xff]
    %v386 = vld [vmem:[%s8 + $0x78] sm:$0xff]
    %v387 = vld [vmem:[%s8 + $0x80] sm:$0xff]
    %v388 = vld [vmem:[%s8 + $0x88] sm:$0xff]
    %v389 = vld [vmem:[%s8 + $0x90] sm:$0xff]
    %v390 = vld [vmem:[%s8 + $0x98] sm:$0xff]
    %v391 = vld [vmem:[%s8 + $0xa0] sm:$0xff]
    %v392 = vld [vmem:[%s8 + $0xa8] sm:$0xff]
    %v393 = vld [vmem:[%s8 + $0xb0] sm:$0xff]
    %v394 = vld [vmem:[%s8 + $0xb8] sm:$0xff]
    %v395 = vld [vmem:[%s8 + $0xc0] sm:$0xff]
    %v396 = vld [vmem:[%s8 + $0xc8] sm:$0xff]
    %v397 = vld [vmem:[%s8 + $0xd0] sm:$0xff]
    %v398 = vld [vmem:[%s8 + $0xd8] sm:$0xff]
    %v399 = vld [vmem:[%s8 + $0xe0] sm:$0xff]
    %v400 = vld [vmem:[%s8 + $0xe8] sm:$0xff]
    %v401 = vld [vmem:[%s8 + $0xf0] sm:$0xff]
    %v402 = vld [vmem:[%s8 + $0xf8] sm:$0xff]
    %v403 = vld [vmem:[#allocation2 + $0x4] sm:$0xf]
    %v404 = vld [vmem:[#allocation2 + $0x8] sm:$0xf]
    %v405 = vld [vmem:[#allocation2 + $0xc] sm:$0xf]
    %v406 = vld [vmem:[#allocation2 + $0x10] sm:$0xf]
    %v407 = vld [vmem:[#allocation2 + $0x14] sm:$0xf]
    %v408 = vld [vmem:[#allocation2 + $0x18] sm:$0xf]
    %v409 = vld [vmem:[#allocation2 + $0x1c] sm:$0x1]
    %v410 = vpack.c.b16 %v327, %v326
    %v411 = vpack.c.b16 %v329, %v328
    %v412 = vpack.c.b16 %v337, %v330
    %v423 = vunpack.c.l.b16 %v403
    %v424 = vunpack.c.l.b16 %v404
    %v425 = vunpack.c.l.b16 %v405
    %v426 = vunpack.c.l.b16 %v406
    %v427 = vunpack.c.l.b16 %v407
    %v428 = vunpack.c.l.b16 %v408
    %v429 = vunpack.c.l.b16 %v409
    %v430 = vpack.c.b16 %v424, %v423
    %v431 = vpack.c.b16 %v426, %v425
    %v432 = vpack.c.b16 %v428, %v427
    %v433 = vpack.c.b16 %v429, %v429
    %v435 = vshrl.u32 %v430, 16
    %v437 = vshll.u32 %v430, 16
    %v439 = vrot.slane %v437, 1
    %v440 = vor.u32 %v435, %v439
    %v442 = vshll.u32 %v431, 16
    %v444 = vrot.slane %v442, 1
    %v445 = vsel %vm339, %v440, %v444
    %v446 = vshrl.u32 %v431, 16
    %v448 = vor.u32 %v446, %v444
    %v450 = vshll.u32 %v432, 16
    %v452 = vrot.slane %v450, 1
    %v453 = vsel %vm339, %v448, %v452
    %v454 = vshrl.u32 %v432, 16
    %v456 = vor.u32 %v454, %v452
    %v458 = vshll.u32 %v433, 16
    %v460 = vrot.slane %v458, 1
    %v461 = vsel %vm339, %v456, %v460
    %s465 = scalar_lea.vmem %s8, 256
    %v466 = vld [vmem:[%s465] sm:$0xff]
    %v467 = vld [vmem:[%s465 + $0x8] sm:$0xff]
    %v468 = vld [vmem:[%s465 + $0x10] sm:$0xff]
    %v469 = vld [vmem:[%s465 + $0x18] sm:$0xff]
    %v470 = vld [vmem:[%s465 + $0x20] sm:$0xff]
    %v471 = vld [vmem:[%s465 + $0x28] sm:$0xff]
    %v472 = vld [vmem:[%s465 + $0x30] sm:$0xff]
    %v473 = vld [vmem:[%s465 + $0x38] sm:$0xff]
    %v474 = vld [vmem:[%s465 + $0x40] sm:$0xff]
    %v475 = vld [vmem:[%s465 + $0x48] sm:$0xff]
    %v476 = vld [vmem:[%s465 + $0x50] sm:$0xff]
    %v477 = vld [vmem:[%s465 + $0x58] sm:$0xff]
    %v478 = vld [vmem:[%s465 + $0x60] sm:$0xff]
    %v479 = vld [vmem:[%s465 + $0x68] sm:$0xff]
    %v480 = vld [vmem:[%s465 + $0x70] sm:$0xff]
    %v481 = vld [vmem:[%s465 + $0x78] sm:$0xff]
    %v482 = vld [vmem:[%s465 + $0x80] sm:$0xff]
    %v483 = vld [vmem:[%s465 + $0x88] sm:$0xff]
    %v484 = vld [vmem:[%s465 + $0x90] sm:$0xff]
    %v485 = vld [vmem:[%s465 + $0x98] sm:$0xff]
    %v486 = vld [vmem:[%s465 + $0xa0] sm:$0xff]
    %v487 = vld [vmem:[%s465 + $0xa8] sm:$0xff]
    %v488 = vld [vmem:[%s465 + $0xb0] sm:$0xff]
    %v489 = vld [vmem:[%s465 + $0xb8] sm:$0xff]
    %v490 = vld [vmem:[%s465 + $0xc0] sm:$0xff]
    %v491 = vld [vmem:[%s465 + $0xc8] sm:$0xff]
    %v492 = vld [vmem:[%s465 + $0xd0] sm:$0xff]
    %v493 = vld [vmem:[%s465 + $0xd8] sm:$0xff]
    %v494 = vld [vmem:[%s465 + $0xe0] sm:$0xff]
    %v495 = vld [vmem:[%s465 + $0xe8] sm:$0xff]
    %v496 = vld [vmem:[%s465 + $0xf0] sm:$0xff]
    %v497 = vld [vmem:[%s465 + $0xf8] sm:$0xff]
    %v530 = vunpack.c.l.b16 %v466
    %v531 = vunpack.c.h.b16 %v466
    %v532 = vunpack.c.l.b16 %v467
    %v533 = vunpack.c.h.b16 %v467
    %v534 = vunpack.c.l.b16 %v468
    %v535 = vunpack.c.h.b16 %v468
    %v536 = vunpack.c.l.b16 %v469
    %v537 = vunpack.c.h.b16 %v469
    %v538 = vunpack.c.l.b16 %v470
    %v539 = vunpack.c.h.b16 %v470
    %v540 = vunpack.c.l.b16 %v471
    %v541 = vunpack.c.h.b16 %v471
    %v542 = vunpack.c.l.b16 %v472
    %v543 = vunpack.c.h.b16 %v472
    %v544 = vunpack.c.l.b16 %v473
    %v545 = vunpack.c.h.b16 %v473
    %v546 = vunpack.c.l.b16 %v474
    %v547 = vunpack.c.h.b16 %v474
    %v548 = vunpack.c.l.b16 %v475
    %v549 = vunpack.c.h.b16 %v475
    %v550 = vunpack.c.l.b16 %v476
    %v551 = vunpack.c.h.b16 %v476
    %v552 = vunpack.c.l.b16 %v477
    %v553 = vunpack.c.h.b16 %v477
    %v554 = vunpack.c.l.b16 %v478
    %v555 = vunpack.c.h.b16 %v478
    %v556 = vunpack.c.l.b16 %v479
    %v557 = vunpack.c.h.b16 %v479
    %v558 = vunpack.c.l.b16 %v480
    %v559 = vunpack.c.h.b16 %v480
    %v560 = vunpack.c.l.b16 %v481
    %v561 = vunpack.c.h.b16 %v481
    %v562 = vunpack.c.l.b16 %v482
    %v563 = vunpack.c.h.b16 %v482
    %v564 = vunpack.c.l.b16 %v483
    %v565 = vunpack.c.h.b16 %v483
    %v566 = vunpack.c.l.b16 %v484
    %v567 = vunpack.c.h.b16 %v484
    %v568 = vunpack.c.l.b16 %v485
    %v569 = vunpack.c.h.b16 %v485
    %v570 = vunpack.c.l.b16 %v486
    %v571 = vunpack.c.h.b16 %v486
    %v572 = vunpack.c.l.b16 %v487
    %v573 = vunpack.c.h.b16 %v487
    %v574 = vunpack.c.l.b16 %v488
    %v575 = vunpack.c.h.b16 %v488
    %v576 = vunpack.c.l.b16 %v489
    %v577 = vunpack.c.h.b16 %v489
    %v578 = vunpack.c.l.b16 %v490
    %v579 = vunpack.c.h.b16 %v490
    %v580 = vunpack.c.l.b16 %v491
    %v581 = vunpack.c.h.b16 %v491
    %v582 = vunpack.c.l.b16 %v492
    %v583 = vunpack.c.h.b16 %v492
    %v584 = vunpack.c.l.b16 %v493
    %v585 = vunpack.c.h.b16 %v493
    %v586 = vunpack.c.l.b16 %v494
    %v587 = vunpack.c.h.b16 %v494
    %v588 = vunpack.c.l.b16 %v495
    %v589 = vunpack.c.h.b16 %v495
    %v590 = vunpack.c.l.b16 %v496
    %v591 = vunpack.c.h.b16 %v496
    %v592 = vunpack.c.l.b16 %v497
    %v593 = vunpack.c.h.b16 %v497
    %v594 = vpack.c.b16 %v532, %v530
    %v595 = vpack.c.b16 %v533, %v531
    %v596 = vpack.c.b16 %v536, %v534
    %v597 = vpack.c.b16 %v537, %v535
    %v598 = vpack.c.b16 %v540, %v538
    %v599 = vpack.c.b16 %v541, %v539
    %v600 = vpack.c.b16 %v544, %v542
    %v601 = vpack.c.b16 %v545, %v543
    %v602 = vpack.c.b16 %v548, %v546
    %v603 = vpack.c.b16 %v549, %v547
    %v604 = vpack.c.b16 %v552, %v550
    %v605 = vpack.c.b16 %v553, %v551
    %v606 = vpack.c.b16 %v556, %v554
    %v607 = vpack.c.b16 %v557, %v555
    %v608 = vpack.c.b16 %v560, %v558
    %v609 = vpack.c.b16 %v561, %v559
    %v610 = vpack.c.b16 %v564, %v562
    %v611 = vpack.c.b16 %v565, %v563
    %v612 = vpack.c.b16 %v568, %v566
    %v613 = vpack.c.b16 %v569, %v567
    %v614 = vpack.c.b16 %v572, %v570
    %v615 = vpack.c.b16 %v573, %v571
    %v616 = vpack.c.b16 %v576, %v574
    %v617 = vpack.c.b16 %v577, %v575
    %v618 = vpack.c.b16 %v580, %v578
    %v619 = vpack.c.b16 %v581, %v579
    %v620 = vpack.c.b16 %v584, %v582
    %v621 = vpack.c.b16 %v585, %v583
    %v622 = vpack.c.b16 %v588, %v586
    %v623 = vpack.c.b16 %v589, %v587
    %v624 = vpack.c.b16 %v592, %v590
    %v625 = vpack.c.b16 %v593, %v591
    %658 = vmatpush.bf16.msra.mxu0 %v608
    %659 = vmatpush.bf16.msra.mxu0 %v606
    %660 = vmatpush.bf16.msra.mxu0 %v604
    %661 = vmatpush.bf16.msra.mxu0 %v602
    %662 = vmatpush.bf16.msra.mxu0 %v600
    %663 = vmatpush.bf16.msra.mxu0 %v598
    %664 = vmatpush.bf16.msra.mxu0 %v596
    %665 = vmatpush.bf16.msra.mxu0 %v594
    %666 = vmatmul.bf16.gmra.mxu0 %v410
    %v667 = vpop.f32.mrf.mxu0
    %v668 = vadd.f32 0.0, %v667
    %v669 = vpop.f32.mrf.mxu0
    %v670 = vadd.f32 0.0, %v669
    %671 = vmatmul.bf16.gmra.mxu0 %v411
    %v672 = vpop.f32.mrf.mxu0
    %v673 = vadd.f32 0.0, %v672
    %v674 = vpop.f32.mrf.mxu0
    %v675 = vadd.f32 0.0, %v674
    %676 = vmatmul.bf16.gmra.mxu0 %v412
    %v677 = vpop.f32.mrf.mxu0
    %v678 = vadd.f32 0.0, %v677
    %v679 = vpop.f32.mrf.mxu0
    %v680 = vadd.f32 0.0, %v679
    %681 = vdwg.mxu0
    %682 = vmatpush.bf16.msra.mxu0 %v624
    %683 = vmatpush.bf16.msra.mxu0 %v622
    %684 = vmatpush.bf16.msra.mxu0 %v620
    %685 = vmatpush.bf16.msra.mxu0 %v618
    %686 = vmatpush.bf16.msra.mxu0 %v616
    %687 = vmatpush.bf16.msra.mxu0 %v614
    %688 = vmatpush.bf16.msra.mxu0 %v612
    %689 = vmatpush.bf16.msra.mxu0 %v610
    %690 = vmatmul.bf16.gmra.mxu0 %v445
    %v691 = vpop.f32.mrf.mxu0
    %v692 = vadd.f32 %v668, %v691
    %v693 = vpop.f32.mrf.mxu0
    %v694 = vadd.f32 %v670, %v693
    %695 = vmatmul.bf16.gmra.mxu0 %v453
    %v696 = vpop.f32.mrf.mxu0
    %v697 = vadd.f32 %v673, %v696
    %v698 = vpop.f32.mrf.mxu0
    %v699 = vadd.f32 %v675, %v698
    %700 = vmatmul.bf16.gmra.mxu0 %v461
    %v701 = vpop.f32.mrf.mxu0
    %v702 = vadd.f32 %v678, %v701
    %v703 = vpop.f32.mrf.mxu0
    %v704 = vadd.f32 %v680, %v703
    %705 = vdwg.mxu0
    %706 = vmatpush.bf16.msra.mxu0 %v609
    %707 = vmatpush.bf16.msra.mxu0 %v607
    %708 = vmatpush.bf16.msra.mxu0 %v605
    %709 = vmatpush.bf16.msra.mxu0 %v603
    %710 = vmatpush.bf16.msra.mxu0 %v601
    %711 = vmatpush.bf16.msra.mxu0 %v599
    %712 = vmatpush.bf16.msra.mxu0 %v597
    %713 = vmatpush.bf16.msra.mxu0 %v595
    %714 = vmatmul.bf16.gmra.mxu0 %v410
    %v715 = vpop.f32.mrf.mxu0
    %v716 = vadd.f32 0.0, %v715
    %v717 = vpop.f32.mrf.mxu0
    %v718 = vadd.f32 0.0, %v717
    %719 = vmatmul.bf16.gmra.mxu0 %v411
    %v720 = vpop.f32.mrf.mxu0
    %v721 = vadd.f32 0.0, %v720
    %v722 = vpop.f32.mrf.mxu0
    %v723 = vadd.f32 0.0, %v722
    %724 = vmatmul.bf16.gmra.mxu0 %v412
    %v725 = vpop.f32.mrf.mxu0
    %v726 = vadd.f32 0.0, %v725
    %v727 = vpop.f32.mrf.mxu0
    %v728 = vadd.f32 0.0, %v727
    %729 = vdwg.mxu0
    %730 = vmatpush.bf16.msra.mxu0 %v625
    %731 = vmatpush.bf16.msra.mxu0 %v623
    %732 = vmatpush.bf16.msra.mxu0 %v621
    %733 = vmatpush.bf16.msra.mxu0 %v619
    %734 = vmatpush.bf16.msra.mxu0 %v617
    %735 = vmatpush.bf16.msra.mxu0 %v615
    %736 = vmatpush.bf16.msra.mxu0 %v613
    %737 = vmatpush.bf16.msra.mxu0 %v611
    %738 = vmatmul.bf16.gmra.mxu0 %v445
    %v739 = vpop.f32.mrf.mxu0
    %v740 = vadd.f32 %v716, %v739
    %v741 = vpop.f32.mrf.mxu0
    %v742 = vadd.f32 %v718, %v741
    %743 = vmatmul.bf16.gmra.mxu0 %v453
    %v744 = vpop.f32.mrf.mxu0
    %v745 = vadd.f32 %v721, %v744
    %v746 = vpop.f32.mrf.mxu0
    %v747 = vadd.f32 %v723, %v746
    %748 = vmatmul.bf16.gmra.mxu0 %v461
    %v749 = vpop.f32.mrf.mxu0
    %v750 = vadd.f32 %v726, %v749
    %v751 = vpop.f32.mrf.mxu0
    %v752 = vadd.f32 %v728, %v751
    %753 = vdwg.mxu0
    %vm754 = vcmask 1044480
    %v755 = vrot.slane %v332, 3
    %v756 = vrot.slane %v333, 3
    %v757 = vsel %vm754, %v755, %v756
    %v758 = vrot.slane %v351, 3
    %v759 = vrot.slane %v359, 3
    %v760 = vsel %vm754, %v758, %v759
    %v761 = vrot.slane %v334, 3
    %v762 = vsel %vm754, %v756, %v761
    %v763 = vrot.slane %v367, 3
    %v764 = vsel %vm754, %v759, %v763
    %v765 = vrot.slane %v335, 3
    %v766 = vsel %vm754, %v761, %v765
    %v767 = vrot.slane %v370, 3
    %v768 = vsel %vm754, %v763, %v767
    %v807 = vunpack.c.l.b16 %v371
    %v808 = vunpack.c.h.b16 %v371
    %v809 = vunpack.c.l.b16 %v372
    %v810 = vunpack.c.h.b16 %v372
    %v811 = vunpack.c.l.b16 %v373
    %v812 = vunpack.c.h.b16 %v373
    %v813 = vunpack.c.l.b16 %v374
    %v814 = vunpack.c.h.b16 %v374
    %v815 = vunpack.c.l.b16 %v375
    %v816 = vunpack.c.h.b16 %v375
    %v817 = vunpack.c.l.b16 %v376
    %v818 = vunpack.c.h.b16 %v376
    %v819 = vunpack.c.l.b16 %v377
    %v820 = vunpack.c.h.b16 %v377
    %v821 = vunpack.c.l.b16 %v378
    %v822 = vunpack.c.h.b16 %v378
    %v823 = vunpack.c.l.b16 %v379
    %v824 = vunpack.c.h.b16 %v379
    %v825 = vunpack.c.l.b16 %v380
    %v826 = vunpack.c.h.b16 %v380
    %v827 = vunpack.c.l.b16 %v381
    %v828 = vunpack.c.h.b16 %v381
    %v829 = vunpack.c.l.b16 %v382
    %v830 = vunpack.c.h.b16 %v382
    %v831 = vunpack.c.l.b16 %v383
    %v832 = vunpack.c.h.b16 %v383
    %v833 = vunpack.c.l.b16 %v384
    %v834 = vunpack.c.h.b16 %v384
    %v835 = vunpack.c.l.b16 %v385
    %v836 = vunpack.c.h.b16 %v385
    %v837 = vunpack.c.l.b16 %v386
    %v838 = vunpack.c.h.b16 %v386
    %v839 = vunpack.c.l.b16 %v387
    %v840 = vunpack.c.h.b16 %v387
    %v841 = vunpack.c.l.b16 %v388
    %v842 = vunpack.c.h.b16 %v388
    %v843 = vunpack.c.l.b16 %v389
    %v844 = vunpack.c.h.b16 %v389
    %v845 = vunpack.c.l.b16 %v390
    %v846 = vunpack.c.h.b16 %v390
    %v847 = vunpack.c.l.b16 %v391
    %v848 = vunpack.c.h.b16 %v391
    %v849 = vunpack.c.l.b16 %v392
    %v850 = vunpack.c.h.b16 %v392
    %v851 = vunpack.c.l.b16 %v393
    %v852 = vunpack.c.h.b16 %v393
    %v853 = vunpack.c.l.b16 %v394
    %v854 = vunpack.c.h.b16 %v394
    %v855 = vunpack.c.l.b16 %v395
    %v856 = vunpack.c.h.b16 %v395
    %v857 = vunpack.c.l.b16 %v396
    %v858 = vunpack.c.h.b16 %v396
    %v859 = vunpack.c.l.b16 %v397
    %v860 = vunpack.c.h.b16 %v397
    %v861 = vunpack.c.l.b16 %v398
    %v862 = vunpack.c.h.b16 %v398
    %v863 = vunpack.c.l.b16 %v399
    %v864 = vunpack.c.h.b16 %v399
    %v865 = vunpack.c.l.b16 %v400
    %v866 = vunpack.c.h.b16 %v400
    %v867 = vunpack.c.l.b16 %v401
    %v868 = vunpack.c.h.b16 %v401
    %v869 = vunpack.c.l.b16 %v402
    %v870 = vunpack.c.h.b16 %v402
    %v871 = vpack.c.b16 %v809, %v807
    %v872 = vpack.c.b16 %v810, %v808
    %v873 = vpack.c.b16 %v813, %v811
    %v874 = vpack.c.b16 %v814, %v812
    %v875 = vpack.c.b16 %v817, %v815
    %v876 = vpack.c.b16 %v818, %v816
    %v877 = vpack.c.b16 %v821, %v819
    %v878 = vpack.c.b16 %v822, %v820
    %v879 = vpack.c.b16 %v825, %v823
    %v880 = vpack.c.b16 %v826, %v824
    %v881 = vpack.c.b16 %v829, %v827
    %v882 = vpack.c.b16 %v830, %v828
    %v883 = vpack.c.b16 %v833, %v831
    %v884 = vpack.c.b16 %v834, %v832
    %v885 = vpack.c.b16 %v837, %v835
    %v886 = vpack.c.b16 %v838, %v836
    %v887 = vpack.c.b16 %v841, %v839
    %v888 = vpack.c.b16 %v842, %v840
    %v889 = vpack.c.b16 %v845, %v843
    %v890 = vpack.c.b16 %v846, %v844
    %v891 = vpack.c.b16 %v849, %v847
    %v892 = vpack.c.b16 %v850, %v848
    %v893 = vpack.c.b16 %v853, %v851
    %v894 = vpack.c.b16 %v854, %v852
    %v895 = vpack.c.b16 %v857, %v855
    %v896 = vpack.c.b16 %v858, %v856
    %v897 = vpack.c.b16 %v861, %v859
    %v898 = vpack.c.b16 %v862, %v860
    %v899 = vpack.c.b16 %v865, %v863
    %v900 = vpack.c.b16 %v866, %v864
    %v901 = vpack.c.b16 %v869, %v867
    %v902 = vpack.c.b16 %v870, %v868
    %935 = vmatpush.bf16.msra.mxu0 %v885
    %936 = vmatpush.bf16.msra.mxu0 %v883
    %937 = vmatpush.bf16.msra.mxu0 %v881
    %938 = vmatpush.bf16.msra.mxu0 %v879
    %939 = vmatpush.bf16.msra.mxu0 %v877
    %940 = vmatpush.bf16.msra.mxu0 %v875
    %941 = vmatpush.bf16.msra.mxu0 %v873
    %942 = vmatpush.bf16.msra.mxu0 %v871
    %943 = vmatmul.bf16.gmra.mxu0 %v757
    %v944 = vpop.f32.mrf.mxu0
    %v945 = vadd.f32 %v692, %v944
    %v946 = vpop.f32.mrf.mxu0
    %v947 = vadd.f32 %v694, %v946
    %948 = vmatmul.bf16.gmra.mxu0 %v762
    %v949 = vpop.f32.mrf.mxu0
    %v950 = vadd.f32 %v697, %v949
    %v951 = vpop.f32.mrf.mxu0
    %v952 = vadd.f32 %v699, %v951
    %953 = vmatmul.bf16.gmra.mxu0 %v766
    %v954 = vpop.f32.mrf.mxu0
    %v955 = vadd.f32 %v702, %v954
    %v956 = vpop.f32.mrf.mxu0
    %v957 = vadd.f32 %v704, %v956
    %958 = vdwg.mxu0
    %959 = vmatpush.bf16.msra.mxu0 %v901
    %960 = vmatpush.bf16.msra.mxu0 %v899
    %961 = vmatpush.bf16.msra.mxu0 %v897
    %962 = vmatpush.bf16.msra.mxu0 %v895
    %963 = vmatpush.bf16.msra.mxu0 %v893
    %964 = vmatpush.bf16.msra.mxu0 %v891
    %965 = vmatpush.bf16.msra.mxu0 %v889
    %966 = vmatpush.bf16.msra.mxu0 %v887
    %967 = vmatmul.bf16.gmra.mxu0 %v760
    %v968 = vpop.f32.mrf.mxu0
    %v969 = vadd.f32 %v945, %v968
    %v970 = vpop.f32.mrf.mxu0
    %v971 = vadd.f32 %v947, %v970
    %972 = vmatmul.bf16.gmra.mxu0 %v764
    %v973 = vpop.f32.mrf.mxu0
    %v974 = vadd.f32 %v950, %v973
    %v975 = vpop.f32.mrf.mxu0
    %v976 = vadd.f32 %v952, %v975
    %977 = vmatmul.bf16.gmra.mxu0 %v768
    %v978 = vpop.f32.mrf.mxu0
    %v979 = vadd.f32 %v955, %v978
    %v980 = vpop.f32.mrf.mxu0
    %v981 = vadd.f32 %v957, %v980
    %982 = vdwg.mxu0
    %983 = vmatpush.bf16.msra.mxu0 %v886
    %984 = vmatpush.bf16.msra.mxu0 %v884
    %985 = vmatpush.bf16.msra.mxu0 %v882
    %986 = vmatpush.bf16.msra.mxu0 %v880
    %987 = vmatpush.bf16.msra.mxu0 %v878
    %988 = vmatpush.bf16.msra.mxu0 %v876
    %989 = vmatpush.bf16.msra.mxu0 %v874
    %990 = vmatpush.bf16.msra.mxu0 %v872
    %991 = vmatmul.bf16.gmra.mxu0 %v757
    %v992 = vpop.f32.mrf.mxu0
    %v993 = vadd.f32 %v740, %v992
    %v994 = vpop.f32.mrf.mxu0
    %v995 = vadd.f32 %v742, %v994
    %996 = vmatmul.bf16.gmra.mxu0 %v762
    %v997 = vpop.f32.mrf.mxu0
    %v998 = vadd.f32 %v745, %v997
    %v999 = vpop.f32.mrf.mxu0
    %v1000 = vadd.f32 %v747, %v999
    %1001 = vmatmul.bf16.gmra.mxu0 %v766
    %v1002 = vpop.f32.mrf.mxu0
    %v1003 = vadd.f32 %v750, %v1002
    %v1004 = vpop.f32.mrf.mxu0
    %v1005 = vadd.f32 %v752, %v1004
    %1006 = vdwg.mxu0
    %1007 = vmatpush.bf16.msra.mxu0 %v902
    %1008 = vmatpush.bf16.msra.mxu0 %v900
    %1009 = vmatpush.bf16.msra.mxu0 %v898
    %1010 = vmatpush.bf16.msra.mxu0 %v896
    %1011 = vmatpush.bf16.msra.mxu0 %v894
    %1012 = vmatpush.bf16.msra.mxu0 %v892
    %1013 = vmatpush.bf16.msra.mxu0 %v890
    %1014 = vmatpush.bf16.msra.mxu0 %v888
    %1015 = vmatmul.bf16.gmra.mxu0 %v760
    %v1016 = vpop.f32.mrf.mxu0
    %v1017 = vadd.f32 %v993, %v1016
    %v1018 = vpop.f32.mrf.mxu0
    %v1019 = vadd.f32 %v995, %v1018
    %1020 = vmatmul.bf16.gmra.mxu0 %v764
    %v1021 = vpop.f32.mrf.mxu0
    %v1022 = vadd.f32 %v998, %v1021
    %v1023 = vpop.f32.mrf.mxu0
    %v1024 = vadd.f32 %v1000, %v1023
    %1025 = vmatmul.bf16.gmra.mxu0 %v768
    %v1026 = vpop.f32.mrf.mxu0
    %v1027 = vadd.f32 %v1003, %v1026
    %v1028 = vpop.f32.mrf.mxu0
    %v1029 = vadd.f32 %v1005, %v1028
    %1030 = vdwg.mxu0
    %v1031 = vld [vmem:[#allocation2 + $0x4] sm:$0xe]
    %v1032 = vld [vmem:[#allocation2 + $0x1c] sm:$0x3]
    %v1034 = vunpack.c.l.b16 %v1031
    %v1035 = vpack.c.b16 %v424, %v1034
    %v1037 = vunpack.c.l.b16 %v1032
    %v1038 = vpack.c.b16 %v1037, %v1037
    %v1040 = vshrl.u32 %v1035, 16
    %v1042 = vshll.u32 %v1035, 16
    %v1044 = vrot.slane %v1042, 1
    %v1045 = vor.u32 %v1040, %v1044
    %v1046 = vsel %vm339, %v1045, %v444
    %v1048 = vshll.u32 %v1038, 16
    %v1050 = vrot.slane %v1048, 1
    %v1051 = vsel %vm339, %v456, %v1050
    %v1052 = vshrl.u32 %v1038, 16
    %v1054 = vor.u32 %v1052, %v1050
    %s1055 = scalar_lea.vmem %s8, 512
    %v1056 = vld [vmem:[%s1055] sm:$0xff]
    %v1057 = vld [vmem:[%s1055 + $0x8] sm:$0xff]
    %v1058 = vld [vmem:[%s1055 + $0x10] sm:$0xff]
    %v1059 = vld [vmem:[%s1055 + $0x18] sm:$0xff]
    %v1060 = vld [vmem:[%s1055 + $0x20] sm:$0xff]
    %v1061 = vld [vmem:[%s1055 + $0x28] sm:$0xff]
    %v1062 = vld [vmem:[%s1055 + $0x30] sm:$0xff]
    %v1063 = vld [vmem:[%s1055 + $0x38] sm:$0xff]
    %v1064 = vld [vmem:[%s1055 + $0x40] sm:$0xff]
    %v1065 = vld [vmem:[%s1055 + $0x48] sm:$0xff]
    %v1066 = vld [vmem:[%s1055 + $0x50] sm:$0xff]
    %v1067 = vld [vmem:[%s1055 + $0x58] sm:$0xff]
    %v1068 = vld [vmem:[%s1055 + $0x60] sm:$0xff]
    %v1069 = vld [vmem:[%s1055 + $0x68] sm:$0xff]
    %v1070 = vld [vmem:[%s1055 + $0x70] sm:$0xff]
    %v1071 = vld [vmem:[%s1055 + $0x78] sm:$0xff]
    %v1072 = vld [vmem:[%s1055 + $0x80] sm:$0xff]
    %v1073 = vld [vmem:[%s1055 + $0x88] sm:$0xff]
    %v1074 = vld [vmem:[%s1055 + $0x90] sm:$0xff]
    %v1075 = vld [vmem:[%s1055 + $0x98] sm:$0xff]
    %v1076 = vld [vmem:[%s1055 + $0xa0] sm:$0xff]
    %v1077 = vld [vmem:[%s1055 + $0xa8] sm:$0xff]
    %v1078 = vld [vmem:[%s1055 + $0xb0] sm:$0xff]
    %v1079 = vld [vmem:[%s1055 + $0xb8] sm:$0xff]
    %v1080 = vld [vmem:[%s1055 + $0xc0] sm:$0xff]
    %v1081 = vld [vmem:[%s1055 + $0xc8] sm:$0xff]
    %v1082 = vld [vmem:[%s1055 + $0xd0] sm:$0xff]
    %v1083 = vld [vmem:[%s1055 + $0xd8] sm:$0xff]
    %v1084 = vld [vmem:[%s1055 + $0xe0] sm:$0xff]
    %v1085 = vld [vmem:[%s1055 + $0xe8] sm:$0xff]
    %v1086 = vld [vmem:[%s1055 + $0xf0] sm:$0xff]
    %v1087 = vld [vmem:[%s1055 + $0xf8] sm:$0xff]
    %vm1088 = vcmask 1046528
    %v1089 = vrot.slane %v1035, 1
    %v1090 = vrot.slane %v431, 1
    %v1091 = vsel %vm1088, %v1089, %v1090
    %v1092 = vrot.slane %v1046, 1
    %v1093 = vrot.slane %v453, 1
    %v1094 = vsel %vm1088, %v1092, %v1093
    %v1095 = vrot.slane %v432, 1
    %v1096 = vsel %vm1088, %v1090, %v1095
    %v1097 = vrot.slane %v1051, 1
    %v1098 = vsel %vm1088, %v1093, %v1097
    %v1099 = vrot.slane %v433, 1
    %v1100 = vsel %vm1088, %v1095, %v1099
    %v1101 = vrot.slane %v1054, 1
    %v1102 = vsel %vm1088, %v1097, %v1101
    %v1141 = vunpack.c.l.b16 %v1056
    %v1142 = vunpack.c.h.b16 %v1056
    %v1143 = vunpack.c.l.b16 %v1057
    %v1144 = vunpack.c.h.b16 %v1057
    %v1145 = vunpack.c.l.b16 %v1058
    %v1146 = vunpack.c.h.b16 %v1058
    %v1147 = vunpack.c.l.b16 %v1059
    %v1148 = vunpack.c.h.b16 %v1059
    %v1149 = vunpack.c.l.b16 %v1060
    %v1150 = vunpack.c.h.b16 %v1060
    %v1151 = vunpack.c.l.b16 %v1061
    %v1152 = vunpack.c.h.b16 %v1061
    %v1153 = vunpack.c.l.b16 %v1062
    %v1154 = vunpack.c.h.b16 %v1062
    %v1155 = vunpack.c.l.b16 %v1063
    %v1156 = vunpack.c.h.b16 %v1063
    %v1157 = vunpack.c.l.b16 %v1064
    %v1158 = vunpack.c.h.b16 %v1064
    %v1159 = vunpack.c.l.b16 %v1065
    %v1160 = vunpack.c.h.b16 %v1065
    %v1161 = vunpack.c.l.b16 %v1066
    %v1162 = vunpack.c.h.b16 %v1066
    %v1163 = vunpack.c.l.b16 %v1067
    %v1164 = vunpack.c.h.b16 %v1067
    %v1165 = vunpack.c.l.b16 %v1068
    %v1166 = vunpack.c.h.b16 %v1068
    %v1167 = vunpack.c.l.b16 %v1069
    %v1168 = vunpack.c.h.b16 %v1069
    %v1169 = vunpack.c.l.b16 %v1070
    %v1170 = vunpack.c.h.b16 %v1070
    %v1171 = vunpack.c.l.b16 %v1071
    %v1172 = vunpack.c.h.b16 %v1071
    %v1173 = vunpack.c.l.b16 %v1072
    %v1174 = vunpack.c.h.b16 %v1072
    %v1175 = vunpack.c.l.b16 %v1073
    %v1176 = vunpack.c.h.b16 %v1073
    %v1177 = vunpack.c.l.b16 %v1074
    %v1178 = vunpack.c.h.b16 %v1074
    %v1179 = vunpack.c.l.b16 %v1075
    %v1180 = vunpack.c.h.b16 %v1075
    %v1181 = vunpack.c.l.b16 %v1076
    %v1182 = vunpack.c.h.b16 %v1076
    %v1183 = vunpack.c.l.b16 %v1077
    %v1184 = vunpack.c.h.b16 %v1077
    %v1185 = vunpack.c.l.b16 %v1078
    %v1186 = vunpack.c.h.b16 %v1078
    %v1187 = vunpack.c.l.b16 %v1079
    %v1188 = vunpack.c.h.b16 %v1079
    %v1189 = vunpack.c.l.b16 %v1080
    %v1190 = vunpack.c.h.b16 %v1080
    %v1191 = vunpack.c.l.b16 %v1081
    %v1192 = vunpack.c.h.b16 %v1081
    %v1193 = vunpack.c.l.b16 %v1082
    %v1194 = vunpack.c.h.b16 %v1082
    %v1195 = vunpack.c.l.b16 %v1083
    %v1196 = vunpack.c.h.b16 %v1083
    %v1197 = vunpack.c.l.b16 %v1084
    %v1198 = vunpack.c.h.b16 %v1084
    %v1199 = vunpack.c.l.b16 %v1085
    %v1200 = vunpack.c.h.b16 %v1085
    %v1201 = vunpack.c.l.b16 %v1086
    %v1202 = vunpack.c.h.b16 %v1086
    %v1203 = vunpack.c.l.b16 %v1087
    %v1204 = vunpack.c.h.b16 %v1087
    %v1205 = vpack.c.b16 %v1143, %v1141
    %v1206 = vpack.c.b16 %v1144, %v1142
    %v1207 = vpack.c.b16 %v1147, %v1145
    %v1208 = vpack.c.b16 %v1148, %v1146
    %v1209 = vpack.c.b16 %v1151, %v1149
    %v1210 = vpack.c.b16 %v1152, %v1150
    %v1211 = vpack.c.b16 %v1155, %v1153
    %v1212 = vpack.c.b16 %v1156, %v1154
    %v1213 = vpack.c.b16 %v1159, %v1157
    %v1214 = vpack.c.b16 %v1160, %v1158
    %v1215 = vpack.c.b16 %v1163, %v1161
    %v1216 = vpack.c.b16 %v1164, %v1162
    %v1217 = vpack.c.b16 %v1167, %v1165
    %v1218 = vpack.c.b16 %v1168, %v1166
    %v1219 = vpack.c.b16 %v1171, %v1169
    %v1220 = vpack.c.b16 %v1172, %v1170
    %v1221 = vpack.c.b16 %v1175, %v1173
    %v1222 = vpack.c.b16 %v1176, %v1174
    %v1223 = vpack.c.b16 %v1179, %v1177
    %v1224 = vpack.c.b16 %v1180, %v1178
    %v1225 = vpack.c.b16 %v1183, %v1181
    %v1226 = vpack.c.b16 %v1184, %v1182
    %v1227 = vpack.c.b16 %v1187, %v1185
    %v1228 = vpack.c.b16 %v1188, %v1186
    %v1229 = vpack.c.b16 %v1191, %v1189
    %v1230 = vpack.c.b16 %v1192, %v1190
    %v1231 = vpack.c.b16 %v1195, %v1193
    %v1232 = vpack.c.b16 %v1196, %v1194
    %v1233 = vpack.c.b16 %v1199, %v1197
    %v1234 = vpack.c.b16 %v1200, %v1198
    %v1235 = vpack.c.b16 %v1203, %v1201
    %v1236 = vpack.c.b16 %v1204, %v1202
    %1269 = vmatpush.bf16.msra.mxu0 %v1219
    %1270 = vmatpush.bf16.msra.mxu0 %v1217
    %1271 = vmatpush.bf16.msra.mxu0 %v1215
    %1272 = vmatpush.bf16.msra.mxu0 %v1213
    %1273 = vmatpush.bf16.msra.mxu0 %v1211
    %1274 = vmatpush.bf16.msra.mxu0 %v1209
    %1275 = vmatpush.bf16.msra.mxu0 %v1207
    %1276 = vmatpush.bf16.msra.mxu0 %v1205
    %1277 = vmatmul.bf16.gmra.mxu0 %v1091
    %v1278 = vpop.f32.mrf.mxu0
    %v1279 = vadd.f32 0.0, %v1278
    %v1280 = vpop.f32.mrf.mxu0
    %v1281 = vadd.f32 0.0, %v1280
    %1282 = vmatmul.bf16.gmra.mxu0 %v1096
    %v1283 = vpop.f32.mrf.mxu0
    %v1284 = vadd.f32 0.0, %v1283
    %v1285 = vpop.f32.mrf.mxu0
    %v1286 = vadd.f32 0.0, %v1285
    %1287 = vmatmul.bf16.gmra.mxu0 %v1100
    %v1288 = vpop.f32.mrf.mxu0
    %v1289 = vadd.f32 0.0, %v1288
    %v1290 = vpop.f32.mrf.mxu0
    %v1291 = vadd.f32 0.0, %v1290
    %1292 = vdwg.mxu0
    %1293 = vmatpush.bf16.msra.mxu0 %v1235
    %1294 = vmatpush.bf16.msra.mxu0 %v1233
    %1295 = vmatpush.bf16.msra.mxu0 %v1231
    %1296 = vmatpush.bf16.msra.mxu0 %v1229
    %1297 = vmatpush.bf16.msra.mxu0 %v1227
    %1298 = vmatpush.bf16.msra.mxu0 %v1225
    %1299 = vmatpush.bf16.msra.mxu0 %v1223
    %1300 = vmatpush.bf16.msra.mxu0 %v1221
    %1301 = vmatmul.bf16.gmra.mxu0 %v1094
    %v1302 = vpop.f32.mrf.mxu0
    %v1303 = vadd.f32 %v1279, %v1302
    %v1304 = vpop.f32.mrf.mxu0
    %v1305 = vadd.f32 %v1281, %v1304
    %1306 = vmatmul.bf16.gmra.mxu0 %v1098
    %v1307 = vpop.f32.mrf.mxu0
    %v1308 = vadd.f32 %v1284, %v1307
    %v1309 = vpop.f32.mrf.mxu0
    %v1310 = vadd.f32 %v1286, %v1309
    %1311 = vmatmul.bf16.gmra.mxu0 %v1102
    %v1312 = vpop.f32.mrf.mxu0
    %v1313 = vadd.f32 %v1289, %v1312
    %v1314 = vpop.f32.mrf.mxu0
    %v1315 = vadd.f32 %v1291, %v1314
    %1316 = vdwg.mxu0
    %1317 = vmatpush.bf16.msra.mxu0 %v1220
    %1318 = vmatpush.bf16.msra.mxu0 %v1218
    %1319 = vmatpush.bf16.msra.mxu0 %v1216
    %1320 = vmatpush.bf16.msra.mxu0 %v1214
    %1321 = vmatpush.bf16.msra.mxu0 %v1212
    %1322 = vmatpush.bf16.msra.mxu0 %v1210
    %1323 = vmatpush.bf16.msra.mxu0 %v1208
    %1324 = vmatpush.bf16.msra.mxu0 %v1206
    %1325 = vmatmul.bf16.gmra.mxu0 %v1091
    %v1326 = vpop.f32.mrf.mxu0
    %v1327 = vadd.f32 0.0, %v1326
    %v1328 = vpop.f32.mrf.mxu0
    %v1329 = vadd.f32 0.0, %v1328
    %1330 = vmatmul.bf16.gmra.mxu0 %v1096
    %v1331 = vpop.f32.mrf.mxu0
    %v1332 = vadd.f32 0.0, %v1331
    %v1333 = vpop.f32.mrf.mxu0
    %v1334 = vadd.f32 0.0, %v1333
    %1335 = vmatmul.bf16.gmra.mxu0 %v1100
    %v1336 = vpop.f32.mrf.mxu0
    %v1337 = vadd.f32 0.0, %v1336
    %v1338 = vpop.f32.mrf.mxu0
    %v1339 = vadd.f32 0.0, %v1338
    %1340 = vdwg.mxu0
    %1341 = vmatpush.bf16.msra.mxu0 %v1236
    %1342 = vmatpush.bf16.msra.mxu0 %v1234
    %1343 = vmatpush.bf16.msra.mxu0 %v1232
    %1344 = vmatpush.bf16.msra.mxu0 %v1230
    %1345 = vmatpush.bf16.msra.mxu0 %v1228
    %1346 = vmatpush.bf16.msra.mxu0 %v1226
    %1347 = vmatpush.bf16.msra.mxu0 %v1224
    %1348 = vmatpush.bf16.msra.mxu0 %v1222
    %1349 = vmatmul.bf16.gmra.mxu0 %v1094
    %v1350 = vpop.f32.mrf.mxu0
    %v1351 = vadd.f32 %v1327, %v1350
    %v1352 = vpop.f32.mrf.mxu0
    %v1353 = vadd.f32 %v1329, %v1352
    %1354 = vmatmul.bf16.gmra.mxu0 %v1098
    %v1355 = vpop.f32.mrf.mxu0
    %v1356 = vadd.f32 %v1332, %v1355
    %v1357 = vpop.f32.mrf.mxu0
    %v1358 = vadd.f32 %v1334, %v1357
    %1359 = vmatmul.bf16.gmra.mxu0 %v1102
    %v1360 = vpop.f32.mrf.mxu0
    %v1361 = vadd.f32 %v1337, %v1360
    %v1362 = vpop.f32.mrf.mxu0
    %v1363 = vadd.f32 %v1339, %v1362
    %1364 = vdwg.mxu0
    %v1365 = vadd.f32 %v969, %v1303
    %v1366 = vadd.f32 %v1017, %v1351
    %v1367 = vadd.f32 %v971, %v1305
    %v1368 = vadd.f32 %v1019, %v1353
    %v1369 = vadd.f32 %v974, %v1308
    %v1370 = vadd.f32 %v1022, %v1356
    %v1371 = vadd.f32 %v976, %v1310
    %v1372 = vadd.f32 %v1024, %v1358
    %v1373 = vadd.f32 %v979, %v1313
    %v1374 = vadd.f32 %v1027, %v1361
    %v1375 = vadd.f32 %v981, %v1315
    %v1376 = vadd.f32 %v1029, %v1363
    %v1377 = vld [vmem:[%s9] sm:$0x3]
    %v1379 = vperm.slane %v1377, 0
    %v1380 = vperm.slane %v1377, 1
    %v1383 = vadd.f32 %v1365, %v1379
    %v1384 = vadd.f32 %v1366, %v1380
    %v1385 = vadd.f32 %v1367, %v1379
    %v1386 = vadd.f32 %v1368, %v1380
    %v1387 = vadd.f32 %v1369, %v1379
    %v1388 = vadd.f32 %v1370, %v1380
    %v1389 = vadd.f32 %v1371, %v1379
    %v1390 = vadd.f32 %v1372, %v1380
    %v1391 = vadd.f32 %v1373, %v1379
    %v1392 = vadd.f32 %v1374, %v1380
    %v1393 = vadd.f32 %v1375, %v1379
    %v1394 = vadd.f32 %v1376, %v1380
    %v1395 = vmax.f32 %v1383, 0.0
    %v1396 = vmax.f32 %v1384, 0.0
    %v1397 = vmax.f32 %v1385, 0.0
    %v1398 = vmax.f32 %v1386, 0.0
    %v1399 = vmax.f32 %v1387, 0.0
    %v1400 = vmax.f32 %v1388, 0.0
    %v1401 = vmax.f32 %v1389, 0.0
    %v1402 = vmax.f32 %v1390, 0.0
    %v1403 = vmax.f32 %v1391, 0.0
    %v1404 = vmax.f32 %v1392, 0.0
    %v1405 = vmax.f32 %v1393, 0.0
    %v1406 = vmax.f32 %v1394, 0.0
    %v1407 = vmul.f32 %v1395, %v149
    %v1408 = vmul.f32 %v1396, %v149
    %v1409 = vmul.f32 %v1397, %v154
    %v1410 = vmul.f32 %v1398, %v154
    %v1411 = vmul.f32 %v1399, %v159
    %v1412 = vmul.f32 %v1400, %v159
    %v1413 = vmul.f32 %v1401, %v164
    %v1414 = vmul.f32 %v1402, %v164
    %v1415 = vmul.f32 %v1403, %v169
    %v1416 = vmul.f32 %v1404, %v169
    %v1417 = vmul.f32 %v1405, %v174
    %v1418 = vmul.f32 %v1406, %v174
    %v1419 = vadd.f32 %v1407, %v1409
    %v1420 = vadd.f32 %v1419, %v1411
    %v1421 = vrot.slane %v1420, 4
    %v1422 = vadd.f32 %v1420, %v1421
    %v1423 = vrot.slane %v1422, 2
    %v1424 = vadd.f32 %v1422, %v1423
    %v1425 = vrot.slane %v1424, 1
    %v1426 = vadd.f32 %v1424, %v1425
    %v1427 = vadd.f32 %v1408, %v1410
    %v1428 = vadd.f32 %v1427, %v1412
    %v1429 = vrot.slane %v1428, 4
    %v1430 = vadd.f32 %v1428, %v1429
    %v1431 = vrot.slane %v1430, 2
    %v1432 = vadd.f32 %v1430, %v1431
    %v1433 = vrot.slane %v1432, 1
    %v1434 = vadd.f32 %v1432, %v1433
    %v1435 = vadd.f32 %v1413, %v1415
    %v1436 = vadd.f32 %v1435, %v1417
    %v1437 = vrot.slane %v1436, 4
    %v1438 = vadd.f32 %v1436, %v1437
    %v1439 = vrot.slane %v1438, 2
    %v1440 = vadd.f32 %v1438, %v1439
    %v1441 = vrot.slane %v1440, 1
    %v1442 = vadd.f32 %v1440, %v1441
    %v1443 = vadd.f32 %v1414, %v1416
    %v1444 = vadd.f32 %v1443, %v1418
    %v1445 = vrot.slane %v1444, 4
    %v1446 = vadd.f32 %v1444, %v1445
    %v1447 = vrot.slane %v1446, 2
    %v1448 = vadd.f32 %v1446, %v1447
    %v1449 = vrot.slane %v1448, 1
    %v1450 = vadd.f32 %v1448, %v1449
    %v1451 = vmul.f32 %v1426, 0.05882353
    %v1452 = vmul.f32 %v1434, 0.05882353
    %v1453 = vmul.f32 %v1442, 0.05882353
    %v1454 = vmul.f32 %v1450, 0.05882353
    %v1455 = vld [vmem:[%s10] sm:$0xff]
    %v1456 = vld [vmem:[%s10 + $0x8] sm:$0xff]
    %v1457 = vld [vmem:[%s10 + $0x10] sm:$0xff]
    %v1458 = vld [vmem:[%s10 + $0x18] sm:$0xff]
    %v1459 = vld [vmem:[%s11] sm:$0x1]
    %v1460 = vld [vmem:[%s12] sm:$0xff]
    %v1461 = vld [vmem:[%s12 + $0x8] sm:$0xff]
    %v1462 = vld [vmem:[%s12 + $0x10] sm:$0xff]
    %v1463 = vld [vmem:[%s12 + $0x18] sm:$0xff]
    %v1464 = vld [vmem:[%s13] sm:$0x3]
    %v1465 = vmul.f32 %v1451, %v1455
    %v1466 = vmul.f32 %v1452, %v1456
    %v1467 = vmul.f32 %v1451, %v1457
    %v1468 = vmul.f32 %v1452, %v1458
    %v1469 = vmul.f32 %v1453, %v1455
    %v1470 = vmul.f32 %v1454, %v1456
    %v1471 = vmul.f32 %v1453, %v1457
    %v1472 = vmul.f32 %v1454, %v1458
    %v1473 = vadd.f32 %v1465, %v1466
    %1474 = vadd.xlane.f32.xlu0 %v1473
    %v1475 = vpop.xlane.xlu0 %1474
    %v1476 = vadd.f32 %v1467, %v1468
    %1477 = vadd.xlane.f32.xlu0 %v1476
    %v1478 = vpop.xlane.xlu0 %1477
    %v1479 = vadd.f32 %v1469, %v1470
    %1480 = vadd.xlane.f32.xlu0 %v1479
    %v1481 = vpop.xlane.xlu0 %1480
    %v1482 = vadd.f32 %v1471, %v1472
    %1483 = vadd.xlane.f32.xlu0 %v1482
    %v1484 = vpop.xlane.xlu0 %1483
    %v1486 = vperm.slane %v1459, 0
    %v1487 = vlaneseq
    %v1488 = vshrl.u32 %v1487, 7
    %1490 = vset.pattern.permute.xlu0 %v1488
    %1491 = vperm.xlu0 %1490, %v1486
    %v1492 = vpop.permute.xlu0 %1491
    %v1493 = vlaneseq
    %v1494 = vshrl.u32 %v1493, 7
    %v1495 = vadd.s32 %v1494, 8
    %1496 = vset.pattern.permute.xlu0 %v1495
    %1497 = vperm.xlu0 %1496, %v1486
    %v1498 = vpop.permute.xlu0 %1497
    %v1501 = vadd.f32 %v1475, %v1492
    %v1502 = vadd.f32 %v1478, %v1498
    %v1503 = vadd.f32 %v1481, %v1492
    %v1504 = vadd.f32 %v1484, %v1498
    %v1505 = vmax.f32 %v1501, 0.0
    %v1506 = vmax.f32 %v1502, 0.0
    %v1507 = vmax.f32 %v1503, 0.0
    %v1508 = vmax.f32 %v1504, 0.0
    %1510 = vset.pattern.permute.xlu0 0
    %1511 = vperm.xlu0 %1510, %v1505
    %v1512 = vpop.permute.xlu0 %1511
    %1515 = vset.pattern.permute.xlu0 0
    %1516 = vperm.xlu0 %1515, %v1506
    %v1517 = vpop.permute.xlu0 %1516
    %1520 = vset.pattern.permute.xlu0 0
    %1521 = vperm.xlu0 %1520, %v1507
    %v1522 = vpop.permute.xlu0 %1521
    %1525 = vset.pattern.permute.xlu0 0
    %1526 = vperm.xlu0 %1525, %v1508
    %v1527 = vpop.permute.xlu0 %1526
    %v1529 = vmul.f32 %v1512, %v1460
    %v1530 = vmul.f32 %v1512, %v1461
    %v1531 = vmul.f32 %v1517, %v1462
    %v1532 = vmul.f32 %v1517, %v1463
    %v1533 = vmul.f32 %v1522, %v1460
    %v1534 = vmul.f32 %v1522, %v1461
    %v1535 = vmul.f32 %v1527, %v1462
    %v1536 = vmul.f32 %v1527, %v1463
    %v1537 = vadd.f32 %v1529, %v1531
    %v1538 = vrot.slane %v1537, 4
    %v1539 = vadd.f32 %v1537, %v1538
    %v1540 = vrot.slane %v1539, 2
    %v1541 = vadd.f32 %v1539, %v1540
    %v1542 = vrot.slane %v1541, 1
    %v1543 = vadd.f32 %v1541, %v1542
    %v1544 = vadd.f32 %v1530, %v1532
    %v1545 = vrot.slane %v1544, 4
    %v1546 = vadd.f32 %v1544, %v1545
    %v1547 = vrot.slane %v1546, 2
    %v1548 = vadd.f32 %v1546, %v1547
    %v1549 = vrot.slane %v1548, 1
    %v1550 = vadd.f32 %v1548, %v1549
    %v1551 = vadd.f32 %v1533, %v1535
    %v1552 = vrot.slane %v1551, 4
    %v1553 = vadd.f32 %v1551, %v1552
    %v1554 = vrot.slane %v1553, 2
    %v1555 = vadd.f32 %v1553, %v1554
    %v1556 = vrot.slane %v1555, 1
    %v1557 = vadd.f32 %v1555, %v1556
    %v1558 = vadd.f32 %v1534, %v1536
    %v1559 = vrot.slane %v1558, 4
    %v1560 = vadd.f32 %v1558, %v1559
    %v1561 = vrot.slane %v1560, 2
    %v1562 = vadd.f32 %v1560, %v1561
    %v1563 = vrot.slane %v1562, 1
    %v1564 = vadd.f32 %v1562, %v1563
    %v1566 = vperm.slane %v1464, 0
    %v1567 = vperm.slane %v1464, 1
    %v1570 = vadd.f32 %v1543, %v1566
    %v1571 = vadd.f32 %v1550, %v1567
    %v1572 = vadd.f32 %v1557, %v1566
    %v1573 = vadd.f32 %v1564, %v1567
    %v1574 = vxor.u32 %v1570, 2147483648
    %v1575 = vxor.u32 %v1571, 2147483648
    %v1576 = vxor.u32 %v1572, 2147483648
    %v1577 = vxor.u32 %v1573, 2147483648
    %v1578 = vmul.f32 %v1574, 1.442695
    %v1579 = vpow.pop %v1578
    %v1580 = vmul.f32 %v1575, 1.442695
    %v1581 = vpow.pop %v1580
    %v1582 = vmul.f32 %v1576, 1.442695
    %v1583 = vpow.pop %v1582
    %v1584 = vmul.f32 %v1577, 1.442695
    %v1585 = vpow.pop %v1584
    %v1586 = vadd.f32 %v1579, 1.0
    %v1587 = vadd.f32 %v1581, 1.0
    %v1588 = vadd.f32 %v1583, 1.0
    %v1589 = vadd.f32 %v1585, 1.0
    %v1590 = vrcp.pop %v1586
    %v1591 = vmul.f32 %v1586, %v1590
    %v1592 = vsub.f32 1.0, %v1591
    %v1593 = vmul.f32 %v1590, %v1592
    %v1594 = vadd.f32 %v1590, %v1593
    %vm1595 = vweird.f32 %v1586
    %vm1596 = vweird.f32 %v1590
    %vm1597 = vmor %vm1595, %vm1596
    %v1598 = vsel %vm1597, %v1590, %v1594
    %v1599 = vand.u32 2147483647, %v1586
    %vm1600 = vcmp.eq.f32.partialorder %v1599, 8.507059e+37
    %v1601 = vand.u32 %v1586, 2147483648
    %v1602 = vor.u32 1.1754944e-38, %v1601
    %v1603 = vsel %vm1600, %v1602, %v1598
    %v1604 = vmul.f32 1.0, %v1603
    %v1605 = vrcp.pop %v1587
    %v1606 = vmul.f32 %v1587, %v1605
    %v1607 = vsub.f32 1.0, %v1606
    %v1608 = vmul.f32 %v1605, %v1607
    %v1609 = vadd.f32 %v1605, %v1608
    %vm1610 = vweird.f32 %v1587
    %vm1611 = vweird.f32 %v1605
    %vm1612 = vmor %vm1610, %vm1611
    %v1613 = vsel %vm1612, %v1605, %v1609
    %v1614 = vand.u32 2147483647, %v1587
    %vm1615 = vcmp.eq.f32.partialorder %v1614, 8.507059e+37
    %v1616 = vand.u32 %v1587, 2147483648
    %v1617 = vor.u32 1.1754944e-38, %v1616
    %v1618 = vsel %vm1615, %v1617, %v1613
    %v1619 = vmul.f32 1.0, %v1618
    %v1620 = vrcp.pop %v1588
    %v1621 = vmul.f32 %v1588, %v1620
    %v1622 = vsub.f32 1.0, %v1621
    %v1623 = vmul.f32 %v1620, %v1622
    %v1624 = vadd.f32 %v1620, %v1623
    %vm1625 = vweird.f32 %v1588
    %vm1626 = vweird.f32 %v1620
    %vm1627 = vmor %vm1625, %vm1626
    %v1628 = vsel %vm1627, %v1620, %v1624
    %v1629 = vand.u32 2147483647, %v1588
    %vm1630 = vcmp.eq.f32.partialorder %v1629, 8.507059e+37
    %v1631 = vand.u32 %v1588, 2147483648
    %v1632 = vor.u32 1.1754944e-38, %v1631
    %v1633 = vsel %vm1630, %v1632, %v1628
    %v1634 = vmul.f32 1.0, %v1633
    %v1635 = vrcp.pop %v1589
    %v1636 = vmul.f32 %v1589, %v1635
    %v1637 = vsub.f32 1.0, %v1636
    %v1638 = vmul.f32 %v1635, %v1637
    %v1639 = vadd.f32 %v1635, %v1638
    %vm1640 = vweird.f32 %v1589
    %vm1641 = vweird.f32 %v1635
    %vm1642 = vmor %vm1640, %vm1641
    %v1643 = vsel %vm1642, %v1635, %v1639
    %v1644 = vand.u32 2147483647, %v1589
    %vm1645 = vcmp.eq.f32.partialorder %v1644, 8.507059e+37
    %v1646 = vand.u32 %v1589, 2147483648
    %v1647 = vor.u32 1.1754944e-38, %v1646
    %v1648 = vsel %vm1645, %v1647, %v1643
    %v1649 = vmul.f32 1.0, %v1648
    %v1650 = vperm.slane %v1604, 0
    %v1651 = vperm.slane %v1619, 0
    %v1652 = vperm.slane %v1634, 0
    %v1653 = vperm.slane %v1649, 0
    %v1654 = vmul.f32 %v1407, %v1650
    %v1655 = vmul.f32 %v1408, %v1651
    %v1656 = vmul.f32 %v1409, %v1650
    %v1657 = vmul.f32 %v1410, %v1651
    %v1658 = vmul.f32 %v1411, %v1650
    %v1659 = vmul.f32 %v1412, %v1651
    %v1660 = vmul.f32 %v1413, %v1652
    %v1661 = vmul.f32 %v1414, %v1653
    %v1662 = vmul.f32 %v1415, %v1652
    %v1663 = vmul.f32 %v1416, %v1653
    %v1664 = vmul.f32 %v1417, %v1652
    %v1665 = vmul.f32 %v1418, %v1653
    %v1666 = vpack.c.bf16 %v1655, %v1654
    %v1667 = vpack.c.bf16 %v1657, %v1656
    %v1668 = vpack.c.bf16 %v1659, %v1658
    %v1669 = vpack.c.bf16 %v1661, %v1660
    %v1670 = vpack.c.bf16 %v1663, %v1662
    %v1671 = vpack.c.bf16 %v1665, %v1664
    %1672 = vst [vmem:[#allocation3 + $0x8] sm:$0xff] %v1666
    %1673 = vst [vmem:[#allocation3 + $0x10] sm:$0xff] %v1667
    %1674 = vst [vmem:[#allocation3 + $0x18] sm:$0xff] %v1668
    %1675 = vst [vmem:[#allocation3 + $0x20] sm:$0xff] %v1669
    %1676 = vst [vmem:[#allocation3 + $0x28] sm:$0xff] %v1670
    %1677 = vst [vmem:[#allocation3 + $0x30] sm:$0xff] %v1671
    %v1678 = vld [vmem:[#allocation3] sm:$0x88]
    %v1679 = vld [vmem:[#allocation3 + $0x8] sm:$0xff]
    %v1680 = vld [vmem:[#allocation3 + $0x10] sm:$0xff]
    %v1681 = vld [vmem:[#allocation3 + $0x18] sm:$0xff]
    %v1682 = vld [vmem:[#allocation3 + $0x20] sm:$0xff]
    %v1683 = vld [vmem:[#allocation3 + $0x28] sm:$0xff]
    %v1684 = vld [vmem:[#allocation3 + $0x30] sm:$0xff]
    %v1685 = vld [vmem:[%s14] sm:$0xf]
    %v1686 = vld [vmem:[%s14 + $0x4] sm:$0xf]
    %v1687 = vld [vmem:[%s14 + $0x8] sm:$0xf]
    %v1688 = vld [vmem:[%s14 + $0xc] sm:$0xf]
    %v1689 = vld [vmem:[%s14 + $0x10] sm:$0xf]
    %v1690 = vld [vmem:[%s14 + $0x14] sm:$0xf]
    %v1691 = vld [vmem:[%s14 + $0x18] sm:$0xf]
    %v1692 = vld [vmem:[%s14 + $0x1c] sm:$0xf]
    %v1693 = vld [vmem:[%s14 + $0x20] sm:$0xf]
    %v1694 = vld [vmem:[%s14 + $0x24] sm:$0xf]
    %v1695 = vld [vmem:[%s14 + $0x28] sm:$0xf]
    %v1696 = vld [vmem:[%s14 + $0x2c] sm:$0xf]
    %v1697 = vld [vmem:[%s14 + $0x30] sm:$0xf]
    %v1698 = vld [vmem:[%s14 + $0x34] sm:$0xf]
    %v1699 = vld [vmem:[%s14 + $0x38] sm:$0xf]
    %v1700 = vld [vmem:[%s14 + $0x3c] sm:$0xf]
    %v1701 = vld [vmem:[%s14 + $0x40] sm:$0xf]
    %v1702 = vld [vmem:[%s14 + $0x44] sm:$0xf]
    %v1703 = vld [vmem:[%s14 + $0x48] sm:$0xf]
    %v1704 = vld [vmem:[%s14 + $0x4c] sm:$0xf]
    %v1705 = vld [vmem:[%s14 + $0x50] sm:$0xf]
    %v1706 = vld [vmem:[%s14 + $0x54] sm:$0xf]
    %v1707 = vld [vmem:[%s14 + $0x58] sm:$0xf]
    %v1708 = vld [vmem:[%s14 + $0x5c] sm:$0xf]
    %v1709 = vld [vmem:[%s14 + $0x60] sm:$0xf]
    %v1710 = vld [vmem:[%s14 + $0x64] sm:$0xf]
    %v1711 = vld [vmem:[%s14 + $0x68] sm:$0xf]
    %v1712 = vld [vmem:[%s14 + $0x6c] sm:$0xf]
    %v1713 = vld [vmem:[%s14 + $0x70] sm:$0xf]
    %v1714 = vld [vmem:[%s14 + $0x74] sm:$0xf]
    %v1715 = vld [vmem:[%s14 + $0x78] sm:$0xf]
    %v1716 = vld [vmem:[%s14 + $0x7c] sm:$0xf]
    %s1717 = scalar_lea.vmem %s14, 128
    %v1718 = vld [vmem:[%s1717] sm:$0xf]
    %v1719 = vld [vmem:[%s1717 + $0x4] sm:$0xf]
    %v1720 = vld [vmem:[%s1717 + $0x8] sm:$0xf]
    %v1721 = vld [vmem:[%s1717 + $0xc] sm:$0xf]
    %v1722 = vld [vmem:[%s1717 + $0x10] sm:$0xf]
    %v1723 = vld [vmem:[%s1717 + $0x14] sm:$0xf]
    %v1724 = vld [vmem:[%s1717 + $0x18] sm:$0xf]
    %v1725 = vld [vmem:[%s1717 + $0x1c] sm:$0xf]
    %v1726 = vld [vmem:[%s1717 + $0x20] sm:$0xf]
    %v1727 = vld [vmem:[%s1717 + $0x24] sm:$0xf]
    %v1728 = vld [vmem:[%s1717 + $0x28] sm:$0xf]
    %v1729 = vld [vmem:[%s1717 + $0x2c] sm:$0xf]
    %v1730 = vld [vmem:[%s1717 + $0x30] sm:$0xf]
    %v1731 = vld [vmem:[%s1717 + $0x34] sm:$0xf]
    %v1732 = vld [vmem:[%s1717 + $0x38] sm:$0xf]
    %v1733 = vld [vmem:[%s1717 + $0x3c] sm:$0xf]
    %v1734 = vld [vmem:[%s1717 + $0x40] sm:$0xf]
    %v1735 = vld [vmem:[%s1717 + $0x44] sm:$0xf]
    %v1736 = vld [vmem:[%s1717 + $0x48] sm:$0xf]
    %v1737 = vld [vmem:[%s1717 + $0x4c] sm:$0xf]
    %v1738 = vld [vmem:[%s1717 + $0x50] sm:$0xf]
    %v1739 = vld [vmem:[%s1717 + $0x54] sm:$0xf]
    %v1740 = vld [vmem:[%s1717 + $0x58] sm:$0xf]
    %v1741 = vld [vmem:[%s1717 + $0x5c] sm:$0xf]
    %v1742 = vld [vmem:[%s1717 + $0x60] sm:$0xf]
    %v1743 = vld [vmem:[%s1717 + $0x64] sm:$0xf]
    %v1744 = vld [vmem:[%s1717 + $0x68] sm:$0xf]
    %v1745 = vld [vmem:[%s1717 + $0x6c] sm:$0xf]
    %v1746 = vld [vmem:[%s1717 + $0x70] sm:$0xf]
    %v1747 = vld [vmem:[%s1717 + $0x74] sm:$0xf]
    %v1748 = vld [vmem:[%s1717 + $0x78] sm:$0xf]
    %v1749 = vld [vmem:[%s1717 + $0x7c] sm:$0xf]
    %v1756 = vunpack.c.l.b16 %v1679
    %v1757 = vunpack.c.h.b16 %v1679
    %v1758 = vunpack.c.l.b16 %v1680
    %v1759 = vunpack.c.h.b16 %v1680
    %v1760 = vunpack.c.l.b16 %v1681
    %v1761 = vunpack.c.h.b16 %v1681
    %v1762 = vunpack.c.l.b16 %v1682
    %v1763 = vunpack.c.h.b16 %v1682
    %v1764 = vunpack.c.l.b16 %v1683
    %v1765 = vunpack.c.h.b16 %v1683
    %v1766 = vunpack.c.l.b16 %v1684
    %v1767 = vunpack.c.h.b16 %v1684
    %v1768 = vpack.c.b16 %v1758, %v1756
    %v1769 = vpack.c.b16 %v1759, %v1757
    %v1770 = vpack.c.b16 %v1762, %v1760
    %v1771 = vpack.c.b16 %v1763, %v1761
    %v1772 = vpack.c.b16 %v1766, %v1764
    %v1773 = vpack.c.b16 %v1767, %v1765
    %v1812 = vunpack.c.l.b16 %v1718
    %v1813 = vunpack.c.l.b16 %v1719
    %v1814 = vunpack.c.l.b16 %v1720
    %v1815 = vunpack.c.l.b16 %v1721
    %v1816 = vunpack.c.l.b16 %v1722
    %v1817 = vunpack.c.l.b16 %v1723
    %v1818 = vunpack.c.l.b16 %v1724
    %v1819 = vunpack.c.l.b16 %v1725
    %v1820 = vunpack.c.l.b16 %v1726
    %v1821 = vunpack.c.l.b16 %v1727
    %v1822 = vunpack.c.l.b16 %v1728
    %v1823 = vunpack.c.l.b16 %v1729
    %v1824 = vunpack.c.l.b16 %v1730
    %v1825 = vunpack.c.l.b16 %v1731
    %v1826 = vunpack.c.l.b16 %v1732
    %v1827 = vunpack.c.l.b16 %v1733
    %v1828 = vunpack.c.l.b16 %v1734
    %v1829 = vunpack.c.l.b16 %v1735
    %v1830 = vunpack.c.l.b16 %v1736
    %v1831 = vunpack.c.l.b16 %v1737
    %v1832 = vunpack.c.l.b16 %v1738
    %v1833 = vunpack.c.l.b16 %v1739
    %v1834 = vunpack.c.l.b16 %v1740
    %v1835 = vunpack.c.l.b16 %v1741
    %v1836 = vunpack.c.l.b16 %v1742
    %v1837 = vunpack.c.l.b16 %v1743
    %v1838 = vunpack.c.l.b16 %v1744
    %v1839 = vunpack.c.l.b16 %v1745
    %v1840 = vunpack.c.l.b16 %v1746
    %v1841 = vunpack.c.l.b16 %v1747
    %v1842 = vunpack.c.l.b16 %v1748
    %v1843 = vunpack.c.l.b16 %v1749
    %v1844 = vpack.c.b16 %v1813, %v1812
    %v1845 = vpack.c.b16 %v1815, %v1814
    %v1846 = vpack.c.b16 %v1817, %v1816
    %v1847 = vpack.c.b16 %v1819, %v1818
    %v1848 = vpack.c.b16 %v1821, %v1820
    %v1849 = vpack.c.b16 %v1823, %v1822
    %v1850 = vpack.c.b16 %v1825, %v1824
    %v1851 = vpack.c.b16 %v1827, %v1826
    %v1852 = vpack.c.b16 %v1829, %v1828
    %v1853 = vpack.c.b16 %v1831, %v1830
    %v1854 = vpack.c.b16 %v1833, %v1832
    %v1855 = vpack.c.b16 %v1835, %v1834
    %v1856 = vpack.c.b16 %v1837, %v1836
    %v1857 = vpack.c.b16 %v1839, %v1838
    %v1858 = vpack.c.b16 %v1841, %v1840
    %v1859 = vpack.c.b16 %v1843, %v1842
    %1876 = vmatpush.bf16.msra.mxu0 %v1851
    %1877 = vmatpush.bf16.msra.mxu0 %v1850
    %1878 = vmatpush.bf16.msra.mxu0 %v1849
    %1879 = vmatpush.bf16.msra.mxu0 %v1848
    %1880 = vmatpush.bf16.msra.mxu0 %v1847
    %1881 = vmatpush.bf16.msra.mxu0 %v1846
    %1882 = vmatpush.bf16.msra.mxu0 %v1845
    %1883 = vmatpush.bf16.msra.mxu0 %v1844
    %1884 = vmatmul.bf16.gmra.mxu0 %v1768
    %v1885 = vpop.f32.mrf.mxu0
    %v1886 = vadd.f32 0.0, %v1885
    %v1887 = vpop.f32.mrf.mxu0
    %v1888 = vadd.f32 0.0, %v1887
    %1889 = vmatmul.bf16.gmra.mxu0 %v1770
    %v1890 = vpop.f32.mrf.mxu0
    %v1891 = vadd.f32 0.0, %v1890
    %v1892 = vpop.f32.mrf.mxu0
    %v1893 = vadd.f32 0.0, %v1892
    %1894 = vmatmul.bf16.gmra.mxu0 %v1772
    %v1895 = vpop.f32.mrf.mxu0
    %v1896 = vadd.f32 0.0, %v1895
    %v1897 = vpop.f32.mrf.mxu0
    %v1898 = vadd.f32 0.0, %v1897
    %1899 = vdwg.mxu0
    %1900 = vmatpush.bf16.msra.mxu0 %v1859
    %1901 = vmatpush.bf16.msra.mxu0 %v1858
    %1902 = vmatpush.bf16.msra.mxu0 %v1857
    %1903 = vmatpush.bf16.msra.mxu0 %v1856
    %1904 = vmatpush.bf16.msra.mxu0 %v1855
    %1905 = vmatpush.bf16.msra.mxu0 %v1854
    %1906 = vmatpush.bf16.msra.mxu0 %v1853
    %1907 = vmatpush.bf16.msra.mxu0 %v1852
    %1908 = vmatmul.bf16.gmra.mxu0 %v1769
    %v1909 = vpop.f32.mrf.mxu0
    %v1910 = vadd.f32 %v1886, %v1909
    %v1911 = vpop.f32.mrf.mxu0
    %v1912 = vadd.f32 %v1888, %v1911
    %1913 = vmatmul.bf16.gmra.mxu0 %v1771
    %v1914 = vpop.f32.mrf.mxu0
    %v1915 = vadd.f32 %v1891, %v1914
    %v1916 = vpop.f32.mrf.mxu0
    %v1917 = vadd.f32 %v1893, %v1916
    %1918 = vmatmul.bf16.gmra.mxu0 %v1773
    %v1919 = vpop.f32.mrf.mxu0
    %v1920 = vadd.f32 %v1896, %v1919
    %v1921 = vpop.f32.mrf.mxu0
    %v1922 = vadd.f32 %v1898, %v1921
    %1923 = vdwg.mxu0
    %v1925 = vunpack.c.l.b16 %v1678
    %v1926 = vunpack.c.h.b16 %v1678
    %v1927 = vpack.c.b16 %v1756, %v1925
    %v1928 = vpack.c.b16 %v1757, %v1926
    %v1929 = vpack.c.b16 %v1760, %v1758
    %v1930 = vpack.c.b16 %v1761, %v1759
    %v1931 = vpack.c.b16 %v1764, %v1762
    %v1932 = vpack.c.b16 %v1765, %v1763
    %v1933 = vpack.c.b16 %v1766, %v1766
    %v1934 = vpack.c.b16 %v1767, %v1767
    %vm1935 = vsmask.f32 4352
    %v1937 = vshrl.u32 %v1927, 16
    %v1939 = vrot.slane %v1937, 3
    %v1940 = vshll.u32 %v1927, 16
    %v1942 = vrot.slane %v1940, 4
    %v1943 = vor.u32 %v1939, %v1942
    %v1945 = vshrl.u32 %v1929, 16
    %v1947 = vrot.slane %v1945, 3
    %v1948 = vshll.u32 %v1929, 16
    %v1950 = vrot.slane %v1948, 4
    %v1951 = vor.u32 %v1947, %v1950
    %v1952 = vsel %vm1935, %v1943, %v1951
    %v1954 = vshrl.u32 %v1928, 16
    %v1956 = vrot.slane %v1954, 3
    %v1957 = vshll.u32 %v1928, 16
    %v1959 = vrot.slane %v1957, 4
    %v1960 = vor.u32 %v1956, %v1959
    %v1962 = vshrl.u32 %v1930, 16
    %v1964 = vrot.slane %v1962, 3
    %v1965 = vshll.u32 %v1930, 16
    %v1967 = vrot.slane %v1965, 4
    %v1968 = vor.u32 %v1964, %v1967
    %v1969 = vsel %vm1935, %v1960, %v1968
    %v1971 = vshrl.u32 %v1931, 16
    %v1973 = vrot.slane %v1971, 3
    %v1974 = vshll.u32 %v1931, 16
    %v1976 = vrot.slane %v1974, 4
    %v1977 = vor.u32 %v1973, %v1976
    %v1978 = vsel %vm1935, %v1951, %v1977
    %v1980 = vshrl.u32 %v1932, 16
    %v1982 = vrot.slane %v1980, 3
    %v1983 = vshll.u32 %v1932, 16
    %v1985 = vrot.slane %v1983, 4
    %v1986 = vor.u32 %v1982, %v1985
    %v1987 = vsel %vm1935, %v1968, %v1986
    %v1989 = vshrl.u32 %v1933, 16
    %v1991 = vrot.slane %v1989, 3
    %v1992 = vshll.u32 %v1933, 16
    %v1994 = vrot.slane %v1992, 4
    %v1995 = vor.u32 %v1991, %v1994
    %v1996 = vsel %vm1935, %v1977, %v1995
    %v1998 = vshrl.u32 %v1934, 16
    %v2000 = vrot.slane %v1998, 3
    %v2001 = vshll.u32 %v1934, 16
    %v2003 = vrot.slane %v2001, 4
    %v2004 = vor.u32 %v2000, %v2003
    %v2005 = vsel %vm1935, %v1986, %v2004
    %v2044 = vunpack.c.l.b16 %v1685
    %v2045 = vunpack.c.l.b16 %v1686
    %v2046 = vunpack.c.l.b16 %v1687
    %v2047 = vunpack.c.l.b16 %v1688
    %v2048 = vunpack.c.l.b16 %v1689
    %v2049 = vunpack.c.l.b16 %v1690
    %v2050 = vunpack.c.l.b16 %v1691
    %v2051 = vunpack.c.l.b16 %v1692
    %v2052 = vunpack.c.l.b16 %v1693
    %v2053 = vunpack.c.l.b16 %v1694
    %v2054 = vunpack.c.l.b16 %v1695
    %v2055 = vunpack.c.l.b16 %v1696
    %v2056 = vunpack.c.l.b16 %v1697
    %v2057 = vunpack.c.l.b16 %v1698
    %v2058 = vunpack.c.l.b16 %v1699
    %v2059 = vunpack.c.l.b16 %v1700
    %v2060 = vunpack.c.l.b16 %v1701
    %v2061 = vunpack.c.l.b16 %v1702
    %v2062 = vunpack.c.l.b16 %v1703
    %v2063 = vunpack.c.l.b16 %v1704
    %v2064 = vunpack.c.l.b16 %v1705
    %v2065 = vunpack.c.l.b16 %v1706
    %v2066 = vunpack.c.l.b16 %v1707
    %v2067 = vunpack.c.l.b16 %v1708
    %v2068 = vunpack.c.l.b16 %v1709
    %v2069 = vunpack.c.l.b16 %v1710
    %v2070 = vunpack.c.l.b16 %v1711
    %v2071 = vunpack.c.l.b16 %v1712
    %v2072 = vunpack.c.l.b16 %v1713
    %v2073 = vunpack.c.l.b16 %v1714
    %v2074 = vunpack.c.l.b16 %v1715
    %v2075 = vunpack.c.l.b16 %v1716
    %v2076 = vpack.c.b16 %v2045, %v2044
    %v2077 = vpack.c.b16 %v2047, %v2046
    %v2078 = vpack.c.b16 %v2049, %v2048
    %v2079 = vpack.c.b16 %v2051, %v2050
    %v2080 = vpack.c.b16 %v2053, %v2052
    %v2081 = vpack.c.b16 %v2055, %v2054
    %v2082 = vpack.c.b16 %v2057, %v2056
    %v2083 = vpack.c.b16 %v2059, %v2058
    %v2084 = vpack.c.b16 %v2061, %v2060
    %v2085 = vpack.c.b16 %v2063, %v2062
    %v2086 = vpack.c.b16 %v2065, %v2064
    %v2087 = vpack.c.b16 %v2067, %v2066
    %v2088 = vpack.c.b16 %v2069, %v2068
    %v2089 = vpack.c.b16 %v2071, %v2070
    %v2090 = vpack.c.b16 %v2073, %v2072
    %v2091 = vpack.c.b16 %v2075, %v2074
    %2108 = vmatpush.bf16.msra.mxu0 %v2083
    %2109 = vmatpush.bf16.msra.mxu0 %v2082
    %2110 = vmatpush.bf16.msra.mxu0 %v2081
    %2111 = vmatpush.bf16.msra.mxu0 %v2080
    %2112 = vmatpush.bf16.msra.mxu0 %v2079
    %2113 = vmatpush.bf16.msra.mxu0 %v2078
    %2114 = vmatpush.bf16.msra.mxu0 %v2077
    %2115 = vmatpush.bf16.msra.mxu0 %v2076
    %2116 = vmatmul.bf16.gmra.mxu0 %v1952
    %v2117 = vpop.f32.mrf.mxu0
    %v2118 = vadd.f32 %v1910, %v2117
    %v2119 = vpop.f32.mrf.mxu0
    %v2120 = vadd.f32 %v1912, %v2119
    %2121 = vmatmul.bf16.gmra.mxu0 %v1978
    %v2122 = vpop.f32.mrf.mxu0
    %v2123 = vadd.f32 %v1915, %v2122
    %v2124 = vpop.f32.mrf.mxu0
    %v2125 = vadd.f32 %v1917, %v2124
    %2126 = vmatmul.bf16.gmra.mxu0 %v1996
    %v2127 = vpop.f32.mrf.mxu0
    %v2128 = vadd.f32 %v1920, %v2127
    %v2129 = vpop.f32.mrf.mxu0
    %v2130 = vadd.f32 %v1922, %v2129
    %2131 = vdwg.mxu0
    %2132 = vmatpush.bf16.msra.mxu0 %v2091
    %2133 = vmatpush.bf16.msra.mxu0 %v2090
    %2134 = vmatpush.bf16.msra.mxu0 %v2089
    %2135 = vmatpush.bf16.msra.mxu0 %v2088
    %2136 = vmatpush.bf16.msra.mxu0 %v2087
    %2137 = vmatpush.bf16.msra.mxu0 %v2086
    %2138 = vmatpush.bf16.msra.mxu0 %v2085
    %2139 = vmatpush.bf16.msra.mxu0 %v2084
    %2140 = vmatmul.bf16.gmra.mxu0 %v1969
    %v2141 = vpop.f32.mrf.mxu0
    %v2142 = vadd.f32 %v2118, %v2141
    %v2143 = vpop.f32.mrf.mxu0
    %v2144 = vadd.f32 %v2120, %v2143
    %2145 = vmatmul.bf16.gmra.mxu0 %v1987
    %v2146 = vpop.f32.mrf.mxu0
    %v2147 = vadd.f32 %v2123, %v2146
    %v2148 = vpop.f32.mrf.mxu0
    %v2149 = vadd.f32 %v2125, %v2148
    %2150 = vmatmul.bf16.gmra.mxu0 %v2005
    %v2151 = vpop.f32.mrf.mxu0
    %v2152 = vadd.f32 %v2128, %v2151
    %v2153 = vpop.f32.mrf.mxu0
    %v2154 = vadd.f32 %v2130, %v2153
    %2155 = vdwg.mxu0
    %v2156 = vld [vmem:[#allocation3 + $0x8] sm:$0xff]
    %v2157 = vld [vmem:[#allocation3 + $0x10] sm:$0xff]
    %v2158 = vld [vmem:[#allocation3 + $0x18] sm:$0xff]
    %v2159 = vld [vmem:[#allocation3 + $0x20] sm:$0xff]
    %v2160 = vld [vmem:[#allocation3 + $0x28] sm:$0xff]
    %v2161 = vld [vmem:[#allocation3 + $0x30] sm:$0xff]
    %v2162 = vld [vmem:[#allocation3 + $0x38] sm:$0x11]
    %s2163 = scalar_lea.vmem %s14, 256
    %v2164 = vld [vmem:[%s2163] sm:$0xf]
    %v2165 = vld [vmem:[%s2163 + $0x4] sm:$0xf]
    %v2166 = vld [vmem:[%s2163 + $0x8] sm:$0xf]
    %v2167 = vld [vmem:[%s2163 + $0xc] sm:$0xf]
    %v2168 = vld [vmem:[%s2163 + $0x10] sm:$0xf]
    %v2169 = vld [vmem:[%s2163 + $0x14] sm:$0xf]
    %v2170 = vld [vmem:[%s2163 + $0x18] sm:$0xf]
    %v2171 = vld [vmem:[%s2163 + $0x1c] sm:$0xf]
    %v2172 = vld [vmem:[%s2163 + $0x20] sm:$0xf]
    %v2173 = vld [vmem:[%s2163 + $0x24] sm:$0xf]
    %v2174 = vld [vmem:[%s2163 + $0x28] sm:$0xf]
    %v2175 = vld [vmem:[%s2163 + $0x2c] sm:$0xf]
    %v2176 = vld [vmem:[%s2163 + $0x30] sm:$0xf]
    %v2177 = vld [vmem:[%s2163 + $0x34] sm:$0xf]
    %v2178 = vld [vmem:[%s2163 + $0x38] sm:$0xf]
    %v2179 = vld [vmem:[%s2163 + $0x3c] sm:$0xf]
    %v2180 = vld [vmem:[%s2163 + $0x40] sm:$0xf]
    %v2181 = vld [vmem:[%s2163 + $0x44] sm:$0xf]
    %v2182 = vld [vmem:[%s2163 + $0x48] sm:$0xf]
    %v2183 = vld [vmem:[%s2163 + $0x4c] sm:$0xf]
    %v2184 = vld [vmem:[%s2163 + $0x50] sm:$0xf]
    %v2185 = vld [vmem:[%s2163 + $0x54] sm:$0xf]
    %v2186 = vld [vmem:[%s2163 + $0x58] sm:$0xf]
    %v2187 = vld [vmem:[%s2163 + $0x5c] sm:$0xf]
    %v2188 = vld [vmem:[%s2163 + $0x60] sm:$0xf]
    %v2189 = vld [vmem:[%s2163 + $0x64] sm:$0xf]
    %v2190 = vld [vmem:[%s2163 + $0x68] sm:$0xf]
    %v2191 = vld [vmem:[%s2163 + $0x6c] sm:$0xf]
    %v2192 = vld [vmem:[%s2163 + $0x70] sm:$0xf]
    %v2193 = vld [vmem:[%s2163 + $0x74] sm:$0xf]
    %v2194 = vld [vmem:[%s2163 + $0x78] sm:$0xf]
    %v2195 = vld [vmem:[%s2163 + $0x7c] sm:$0xf]
    %v2203 = vunpack.c.l.b16 %v2156
    %v2204 = vunpack.c.h.b16 %v2156
    %v2205 = vunpack.c.l.b16 %v2157
    %v2206 = vunpack.c.h.b16 %v2157
    %v2207 = vunpack.c.l.b16 %v2158
    %v2208 = vunpack.c.h.b16 %v2158
    %v2209 = vunpack.c.l.b16 %v2159
    %v2210 = vunpack.c.h.b16 %v2159
    %v2211 = vunpack.c.l.b16 %v2160
    %v2212 = vunpack.c.h.b16 %v2160
    %v2213 = vunpack.c.l.b16 %v2161
    %v2214 = vunpack.c.h.b16 %v2161
    %v2215 = vunpack.c.l.b16 %v2162
    %v2216 = vunpack.c.h.b16 %v2162
    %v2217 = vpack.c.b16 %v2205, %v2203
    %v2218 = vpack.c.b16 %v2206, %v2204
    %v2219 = vpack.c.b16 %v2209, %v2207
    %v2220 = vpack.c.b16 %v2210, %v2208
    %v2221 = vpack.c.b16 %v2213, %v2211
    %v2222 = vpack.c.b16 %v2214, %v2212
    %v2223 = vpack.c.b16 %v2215, %v2215
    %v2224 = vpack.c.b16 %v2216, %v2216
    %v2226 = vshrl.u32 %v2217, 16
    %v2228 = vshll.u32 %v2217, 16
    %v2230 = vrot.slane %v2228, 1
    %v2231 = vor.u32 %v2226, %v2230
    %v2233 = vshll.u32 %v2219, 16
    %v2235 = vrot.slane %v2233, 1
    %v2236 = vsel %vm339, %v2231, %v2235
    %v2238 = vshrl.u32 %v2218, 16
    %v2240 = vshll.u32 %v2218, 16
    %v2242 = vrot.slane %v2240, 1
    %v2243 = vor.u32 %v2238, %v2242
    %v2245 = vshll.u32 %v2220, 16
    %v2247 = vrot.slane %v2245, 1
    %v2248 = vsel %vm339, %v2243, %v2247
    %v2249 = vshrl.u32 %v2219, 16
    %v2251 = vor.u32 %v2249, %v2235
    %v2253 = vshll.u32 %v2221, 16
    %v2255 = vrot.slane %v2253, 1
    %v2256 = vsel %vm339, %v2251, %v2255
    %v2257 = vshrl.u32 %v2220, 16
    %v2259 = vor.u32 %v2257, %v2247
    %v2261 = vshll.u32 %v2222, 16
    %v2263 = vrot.slane %v2261, 1
    %v2264 = vsel %vm339, %v2259, %v2263
    %v2265 = vshrl.u32 %v2221, 16
    %v2267 = vor.u32 %v2265, %v2255
    %v2269 = vshll.u32 %v2223, 16
    %v2271 = vrot.slane %v2269, 1
    %v2272 = vsel %vm339, %v2267, %v2271
    %v2273 = vshrl.u32 %v2222, 16
    %v2275 = vor.u32 %v2273, %v2263
    %v2277 = vshll.u32 %v2224, 16
    %v2279 = vrot.slane %v2277, 1
    %v2280 = vsel %vm339, %v2275, %v2279
    %v2319 = vunpack.c.l.b16 %v2164
    %v2320 = vunpack.c.l.b16 %v2165
    %v2321 = vunpack.c.l.b16 %v2166
    %v2322 = vunpack.c.l.b16 %v2167
    %v2323 = vunpack.c.l.b16 %v2168
    %v2324 = vunpack.c.l.b16 %v2169
    %v2325 = vunpack.c.l.b16 %v2170
    %v2326 = vunpack.c.l.b16 %v2171
    %v2327 = vunpack.c.l.b16 %v2172
    %v2328 = vunpack.c.l.b16 %v2173
    %v2329 = vunpack.c.l.b16 %v2174
    %v2330 = vunpack.c.l.b16 %v2175
    %v2331 = vunpack.c.l.b16 %v2176
    %v2332 = vunpack.c.l.b16 %v2177
    %v2333 = vunpack.c.l.b16 %v2178
    %v2334 = vunpack.c.l.b16 %v2179
    %v2335 = vunpack.c.l.b16 %v2180
    %v2336 = vunpack.c.l.b16 %v2181
    %v2337 = vunpack.c.l.b16 %v2182
    %v2338 = vunpack.c.l.b16 %v2183
    %v2339 = vunpack.c.l.b16 %v2184
    %v2340 = vunpack.c.l.b16 %v2185
    %v2341 = vunpack.c.l.b16 %v2186
    %v2342 = vunpack.c.l.b16 %v2187
    %v2343 = vunpack.c.l.b16 %v2188
    %v2344 = vunpack.c.l.b16 %v2189
    %v2345 = vunpack.c.l.b16 %v2190
    %v2346 = vunpack.c.l.b16 %v2191
    %v2347 = vunpack.c.l.b16 %v2192
    %v2348 = vunpack.c.l.b16 %v2193
    %v2349 = vunpack.c.l.b16 %v2194
    %v2350 = vunpack.c.l.b16 %v2195
    %v2351 = vpack.c.b16 %v2320, %v2319
    %v2352 = vpack.c.b16 %v2322, %v2321
    %v2353 = vpack.c.b16 %v2324, %v2323
    %v2354 = vpack.c.b16 %v2326, %v2325
    %v2355 = vpack.c.b16 %v2328, %v2327
    %v2356 = vpack.c.b16 %v2330, %v2329
    %v2357 = vpack.c.b16 %v2332, %v2331
    %v2358 = vpack.c.b16 %v2334, %v2333
    %v2359 = vpack.c.b16 %v2336, %v2335
    %v2360 = vpack.c.b16 %v2338, %v2337
    %v2361 = vpack.c.b16 %v2340, %v2339
    %v2362 = vpack.c.b16 %v2342, %v2341
    %v2363 = vpack.c.b16 %v2344, %v2343
    %v2364 = vpack.c.b16 %v2346, %v2345
    %v2365 = vpack.c.b16 %v2348, %v2347
    %v2366 = vpack.c.b16 %v2350, %v2349
    %2383 = vmatpush.bf16.msra.mxu0 %v2358
    %2384 = vmatpush.bf16.msra.mxu0 %v2357
    %2385 = vmatpush.bf16.msra.mxu0 %v2356
    %2386 = vmatpush.bf16.msra.mxu0 %v2355
    %2387 = vmatpush.bf16.msra.mxu0 %v2354
    %2388 = vmatpush.bf16.msra.mxu0 %v2353
    %2389 = vmatpush.bf16.msra.mxu0 %v2352
    %2390 = vmatpush.bf16.msra.mxu0 %v2351
    %2391 = vmatmul.bf16.gmra.mxu0 %v2236
    %v2392 = vpop.f32.mrf.mxu0
    %v2393 = vadd.f32 0.0, %v2392
    %v2394 = vpop.f32.mrf.mxu0
    %v2395 = vadd.f32 0.0, %v2394
    %2396 = vmatmul.bf16.gmra.mxu0 %v2256
    %v2397 = vpop.f32.mrf.mxu0
    %v2398 = vadd.f32 0.0, %v2397
    %v2399 = vpop.f32.mrf.mxu0
    %v2400 = vadd.f32 0.0, %v2399
    %2401 = vmatmul.bf16.gmra.mxu0 %v2272
    %v2402 = vpop.f32.mrf.mxu0
    %v2403 = vadd.f32 0.0, %v2402
    %v2404 = vpop.f32.mrf.mxu0
    %v2405 = vadd.f32 0.0, %v2404
    %2406 = vdwg.mxu0
    %2407 = vmatpush.bf16.msra.mxu0 %v2366
    %2408 = vmatpush.bf16.msra.mxu0 %v2365
    %2409 = vmatpush.bf16.msra.mxu0 %v2364
    %2410 = vmatpush.bf16.msra.mxu0 %v2363
    %2411 = vmatpush.bf16.msra.mxu0 %v2362
    %2412 = vmatpush.bf16.msra.mxu0 %v2361
    %2413 = vmatpush.bf16.msra.mxu0 %v2360
    %2414 = vmatpush.bf16.msra.mxu0 %v2359
    %2415 = vmatmul.bf16.gmra.mxu0 %v2248
    %v2416 = vpop.f32.mrf.mxu0
    %v2417 = vadd.f32 %v2393, %v2416
    %v2418 = vpop.f32.mrf.mxu0
    %v2419 = vadd.f32 %v2395, %v2418
    %2420 = vmatmul.bf16.gmra.mxu0 %v2264
    %v2421 = vpop.f32.mrf.mxu0
    %v2422 = vadd.f32 %v2398, %v2421
    %v2423 = vpop.f32.mrf.mxu0
    %v2424 = vadd.f32 %v2400, %v2423
    %2425 = vmatmul.bf16.gmra.mxu0 %v2280
    %v2426 = vpop.f32.mrf.mxu0
    %v2427 = vadd.f32 %v2403, %v2426
    %v2428 = vpop.f32.mrf.mxu0
    %v2429 = vadd.f32 %v2405, %v2428
    %2430 = vdwg.mxu0
    %v2431 = vadd.f32 %v2142, %v2417
    %v2432 = vadd.f32 %v2144, %v2419
    %v2433 = vadd.f32 %v2147, %v2422
    %v2434 = vadd.f32 %v2149, %v2424
    %v2435 = vadd.f32 %v2152, %v2427
    %v2436 = vadd.f32 %v2154, %v2429
    %v2437 = vld [vmem:[%s15] sm:$0x1]
    %v2439 = vperm.slane %v2437, 0
    %v2441 = vadd.f32 %v2431, %v2439
    %v2442 = vadd.f32 %v2432, %v2439
    %v2443 = vadd.f32 %v2433, %v2439
    %v2444 = vadd.f32 %v2434, %v2439
    %v2445 = vadd.f32 %v2435, %v2439
    %v2446 = vadd.f32 %v2436, %v2439
    %v2447 = vmax.f32 %v2441, 0.0
    %v2448 = vmax.f32 %v2442, 0.0
    %v2449 = vmax.f32 %v2443, 0.0
    %v2450 = vmax.f32 %v2444, 0.0
    %v2451 = vmax.f32 %v2445, 0.0
    %v2452 = vmax.f32 %v2446, 0.0
    %v2453 = vmul.f32 %v2447, %v149
    %v2454 = vmul.f32 %v2448, %v154
    %v2455 = vmul.f32 %v2449, %v159
    %v2456 = vmul.f32 %v2450, %v164
    %v2457 = vmul.f32 %v2451, %v169
    %v2458 = vmul.f32 %v2452, %v174
    %v2459 = vadd.f32 %v2453, %v2454
    %v2460 = vadd.f32 %v2459, %v2455
    %v2461 = vrot.slane %v2460, 4
    %v2462 = vadd.f32 %v2460, %v2461
    %v2463 = vrot.slane %v2462, 2
    %v2464 = vadd.f32 %v2462, %v2463
    %v2465 = vrot.slane %v2464, 1
    %v2466 = vadd.f32 %v2464, %v2465
    %v2467 = vadd.f32 %v2456, %v2457
    %v2468 = vadd.f32 %v2467, %v2458
    %v2469 = vrot.slane %v2468, 4
    %v2470 = vadd.f32 %v2468, %v2469
    %v2471 = vrot.slane %v2470, 2
    %v2472 = vadd.f32 %v2470, %v2471
    %v2473 = vrot.slane %v2472, 1
    %v2474 = vadd.f32 %v2472, %v2473
    %v2475 = vmul.f32 %v2466, 0.05882353
    %v2476 = vmul.f32 %v2474, 0.05882353
    %vm2479 = vcmask 1041409
    %v2480 = vsel %vm2479, %v2476, %v2475
    %2482 = vst [vmem:[#allocation4] sm:$0x3] %v2480
    // Predicated region
    $region66: #{fcn_block_forward.1} parent=1 // pred_check
      _
    $region67: #{fcn_block_forward.1} parent=1 // pred_check_branch
      %2484 = sbr.rel (0) target = $region69
    $region68: #{fcn_block_forward.1} parent=1 // pred_region
      %2486 = vsyncadd [#allocation5], 0
      %s2488 = sshll.u32 [#allocation4], 4
      %s2489 = int_to_ptr.vmem [resolvable:$true] %s2488
      %s2490 = sshll.u32 %s16, 4
      %s2491 = int_to_ptr.hbm [resolvable:$true] %s2490
      %2493 = dma.vmem_to_hbm [thread:$0]  %s2489, 32, %s2491, [#allocation5]
    $region69: #{fcn_block_forward.1} parent=1 // pred_fallthru
      _
    // Predicated region
    $region70: #{fcn_block_forward.1} parent=1 // pred_check
      _
    $region71: #{fcn_block_forward.1} parent=1 // pred_check_branch
      %2495 = sbr.rel (0) target = $region73
    $region72: #{fcn_block_forward.1} parent=1 // pred_region
      %2497 = dma.done [#allocation5], 32
    $region73: #{fcn_block_forward.1} parent=1 // pred_fallthru
      _
    %2498 = vsyncpa [#allocation5], 1

</llo_original>
